<compile_context>
chip_gen: v7x
topology: tpu7x:2x2x1
jax: 0.10.0
libtpu: 0.0.40
codegen_flags: <defaults>
</compile_context>

<pallas_src>
import functools
import math

import jax
import jax.numpy as jnp
from jax import lax
from jax.experimental import pallas as pl
from jax.experimental.pallas import tpu as pltpu


def _ntxent_svm_kernel(supp_ref, query_ref, soh_ref, qoh_ref, blk_ref,
                       nll_ref, correct_ref, *,
                       tau, c_reg, n_pgd_iters, n_proj_iters, beta):
    """One grid step processes a block of T tasks.

    supp_ref / query_ref  : (Pb, D)           stacked task rows (Pb = T*n_way)
    soh_ref  / qoh_ref    : (n_way, Pb)       transposed one-hot labels
                            (classes on sublanes, task-rows on lanes)
    blk_ref               : (Pb, Pb)          same-task block-diagonal mask
    nll_ref  / correct_ref: (1, Pb)           per-query outputs
    """
    Pb, _ = supp_ref.shape
    nw = soh_ref.shape[0]

    S = supp_ref[...].astype(jnp.float32)
    Q = query_ref[...].astype(jnp.float32)
    soh = soh_ref[...].astype(jnp.float32)
    qoh = qoh_ref[...].astype(jnp.float32)
    blk = blk_ref[...]

    # F.normalize(z, p=2, dim=1)
    def l2norm(x):
        nrm = jnp.sqrt(jnp.sum(x * x, axis=-1, keepdims=True))
        return x / jnp.maximum(nrm, 1e-12)

    S = l2norm(S)
    Q = l2norm(Q)

    # Cheap identity (int-iota equality, no float divide/floor).
    r_i = lax.broadcasted_iota(jnp.int32, (Pb, Pb), 0)
    c_i = lax.broadcasted_iota(jnp.int32, (Pb, Pb), 1)
    eye = (r_i == c_i).astype(jnp.float32)

    # One fused D-deep Gram matmul serving both S·Sᵀ and S·Qᵀ, then mask to the
    # per-task diagonal blocks.  (Kronecker kernel kron(K, I)+I of the reference
    # collapses, per class, to exactly K_t + I.)
    SQ = jnp.concatenate([S, Q], axis=0)                                  # (2*Pb, D)
    G2 = jnp.einsum('pd,qd->pq', S, SQ,
                    preferred_element_type=jnp.float32)                   # (Pb, 2*Pb)
    K_bd = G2[:, :Pb] * blk
    compat_bd = G2[:, Pb:] * blk

    U_T = c_reg * soh                          # per-entry upper bound (h)

    # Gershgorin bound on lambda_max of every (K_t + I) block -> safe global step.
    L = 1.0 + jnp.max(jnp.sum(jnp.abs(K_bd), axis=0, keepdims=True),
                      axis=1, keepdims=True)   # (1, 1), always <= n_way + 1
    eta = 1.0 / L

    # Fold the step size into the iteration once (no per-iteration eta broadcast):
    #   y - eta*((K+I) y - onehot)  =  y @ M + b
    M_bf = ((1.0 - eta) * eye - eta * K_bd).astype(jnp.bfloat16)
    b_T = eta * soh                                                        # (nw, Pb)

    def project(V):
        # Per-column projection onto {x : sum_c x_c = 0, x_c <= U_c} via a
        # safeguarded Newton on f(lam) = sum_c min(V_c - lam, U_c)
        # (piecewise-linear, concave, decreasing; <= n_way breakpoints).
        lo = jnp.min(V - U_T, axis=0, keepdims=True)   # f(lo) = sum(U) >= 0
        hi = jnp.max(V, axis=0, keepdims=True)         # f(hi) <= 0
        lam0 = jnp.clip(jnp.mean(V, axis=0, keepdims=True), lo, hi)

        def newton(_, carry):
            lam, lo_c, hi_c = carry
            diff = V - lam
            # One fused sublane reduce for both f and the active-set count.
            both = jnp.concatenate(
                [jnp.minimum(diff, U_T), (diff < U_T).astype(jnp.float32)], axis=1)
            red = jnp.sum(both, axis=0, keepdims=True)          # (1, 2*Pb)
            f = red[:, :Pb]
            nact = red[:, Pb:]
            lo_c = jnp.where(f > 0.0, lam, lo_c)
            hi_c = jnp.where(f > 0.0, hi_c, lam)
            lam_new = jnp.where(nact > 0.5,
                                lam + f / jnp.maximum(nact, 1.0),   # Newton step
                                0.5 * (lo_c + hi_c))                # bisection fallback
            return jnp.clip(lam_new, lo_c, hi_c), lo_c, hi_c

        lam, _, _ = lax.fori_loop(0, n_proj_iters, newton, (lam0, lo, hi),
                                  unroll=True)
        return jnp.minimum(V - lam, U_T)

    # Accelerated (Nesterov, strongly convex: constant beta) projected gradient on
    # the SVM dual:
    #   min 0.5 a^T (K+I) a - onehot^T a  s.t. a <= C_reg*onehot, sum_c a = 0.
    # TODO(synk): approximates qpth's interior-point solution, not bit-exact.
    def pgd(_, carry):
        x_prev, y = carry
        V = jnp.dot(y.astype(jnp.bfloat16), M_bf,
                    preferred_element_type=jnp.float32) + b_T
        x = project(V)
        return x, x + beta * (x - x_prev)

    x0 = jnp.zeros((nw, Pb), dtype=jnp.float32)
    alpha_T, _ = lax.fori_loop(0, n_pgd_iters, pgd, (x0, x0))

    # logits_T[c, q] = tau * sum_i alpha[c, i] * <S_i, Q_q> over same-task pairs.
    logits_T = tau * jnp.dot(alpha_T, compat_bd, preferred_element_type=jnp.float32)

    # Per-query softmax cross-entropy (class axis on sublanes -> sublane reduces).
    m = jnp.max(logits_T, axis=0, keepdims=True)
    lse = m + jnp.log(jnp.sum(jnp.exp(logits_T - m), axis=0, keepdims=True))
    picked = jnp.sum(qoh * logits_T, axis=0, keepdims=True)
    nll = lse - picked                                     # (1, Pb)

    # Accuracy: first-max argmax vs. one-hot label.
    iota_c = lax.broadcasted_iota(jnp.int32, (nw, Pb), 0).astype(jnp.float32)
    big = float(nw)
    pred = jnp.min(jnp.where(logits_T == m, iota_c, big), axis=0, keepdims=True)
    label = jnp.min(jnp.where(qoh > 0.5, iota_c, big), axis=0, keepdims=True)
    correct = (pred == label).astype(jnp.float32)          # (1, Pb)

    nll_ref[...] = nll
    correct_ref[...] = correct


def _tasks_per_block(bs, n_way, max_cols):
    """Tasks per grid step. Keeps Pb = T*n_way <= max_cols and ensures the grid
    has >= 2 steps when there is enough work (so both v7x TensorCores are used)."""
    t = max(1, min(bs, max_cols // max(n_way, 1)))
    if bs >= 2 and bs * n_way > 128:
        t = min(t, -(-bs // 2))          # ceil(bs/2) -> G >= 2
    return t


def ntxent_svm_pallas(support, query, supp_onehot, query_onehot, *,
                      tau=1.0, c_reg=0.1, n_pgd_iters=None, n_proj_iters=None,
                      max_block_cols=256):
    """Batched MetaOptNet-SVM head + softmax CE + accuracy.

    support, query            : (bs, n_way, d)
    supp_onehot, query_onehot : (bs, n_way, n_way)
    Returns per-task (loss, acc), each of shape (bs,).
    """
    assert c_reg >= 0.0
    bs, n_way, d = support.shape

    # kappa <= n_way + 1  ->  ~14*sqrt(kappa) Nesterov iterations reach ~1e-6.
    if n_pgd_iters is None:
        n_pgd_iters = max(40, int(math.ceil(14.0 * math.sqrt(n_way + 1.0))))
    # PWL with <= n_way breakpoints: safeguarded Newton terminates in <= n_way+1.
    if n_proj_iters is None:
        n_proj_iters = n_way + 1
    beta = (math.sqrt(n_way + 1.0) - 1.0) / (math.sqrt(n_way + 1.0) + 1.0)

    T = _tasks_per_block(bs, n_way, max_block_cols)
    G = -(-bs // T)                  # cdiv
    bs_pad = G * T
    if bs_pad != bs:
        pad = ((0, bs_pad - bs), (0, 0), (0, 0))
        support = jnp.pad(support, pad)
        query = jnp.pad(query, pad)
        supp_onehot = jnp.pad(supp_onehot, pad)
        query_onehot = jnp.pad(query_onehot, pad)

    Pb = T * n_way

    supp3 = support.reshape(G, Pb, d).astype(jnp.float32)
    query3 = query.reshape(G, Pb, d).astype(jnp.float32)

    # (bs, row, class) -> (G, class, T*row): classes on sublanes, task-rows on lanes.
    def to_blocked_T(oh):
        oh = oh.astype(jnp.float32).reshape(G, T, n_way, n_way)
        return jnp.transpose(oh, (0, 3, 1, 2)).reshape(G, n_way, Pb)

    soh3 = to_blocked_T(supp_onehot)
    qoh3 = to_blocked_T(query_onehot)

    # Same-task block-diagonal mask, precomputed host-side (identical for every
    # grid step -> DMA'd once; exact integer comparison, no float floor-divide).
    tid = jnp.arange(Pb, dtype=jnp.int32) // n_way
    blk = (tid[:, None] == tid[None, :]).astype(jnp.float32)

    kernel = functools.partial(
        _ntxent_svm_kernel, tau=float(tau), c_reg=float(c_reg),
        n_pgd_iters=int(n_pgd_iters), n_proj_iters=int(n_proj_iters),
        beta=float(beta))

    grid_spec = pltpu.PrefetchScalarGridSpec(
        num_scalar_prefetch=0,
        grid=(G,),
        in_specs=[
            pl.BlockSpec((None, Pb, d), lambda g: (g, 0, 0)),
            pl.BlockSpec((None, Pb, d), lambda g: (g, 0, 0)),
            pl.BlockSpec((None, n_way, Pb), lambda g: (g, 0, 0)),
            pl.BlockSpec((None, n_way, Pb), lambda g: (g, 0, 0)),
            pl.BlockSpec((Pb, Pb), lambda g: (0, 0)),
        ],
        out_specs=[
            pl.BlockSpec((None, 1, Pb), lambda g: (g, 0, 0)),
            pl.BlockSpec((None, 1, Pb), lambda g: (g, 0, 0)),
        ],
    )

    nll, correct = pl.pallas_call(
        kernel,
        out_shape=(jax.ShapeDtypeStruct((G, 1, Pb), jnp.float32),
                   jax.ShapeDtypeStruct((G, 1, Pb), jnp.float32)),
        grid_spec=grid_spec,
        compiler_params=pltpu.CompilerParams(
            # Tasks are independent -> shard the grid across TensorCores (v7x).
            dimension_semantics=("parallel",)),
    )(supp3, query3, soh3, qoh3, blk)

    nll = nll.reshape(bs_pad, n_way)[:bs]
    correct = correct.reshape(bs_pad, n_way)[:bs]
    return nll.mean(axis=1), correct.mean(axis=1)


class NTXentSVMPallas:
    """JAX/Pallas equivalent of NTXent_SVM.forward (distributed=False, get_map=False)."""
    LARGE_NUMBER = 1e9

    def __init__(self, bs=1, n_supp=1, n_query=1, tau=1.0, reg=50.0, multiplier=2):
        assert n_supp == 1 and n_query == 1, "reference reshape only valid for 1-shot/1-query"
        self.bs = bs
        self.n_supp = n_supp
        self.n_query = n_query
        self.tau = tau
        self.reg = reg
        self.multiplier = multiplier

    def __call__(self, z, perm_key):
        n, d = z.shape
        assert self.n_supp + self.n_query == self.multiplier
        assert n % self.multiplier == 0
        n_way_total = n // self.multiplier
        support = z[: self.n_supp * n_way_total]
        query = z[self.n_supp * n_way_total:]

        bs = self.bs
        n_way = n_way_total // bs
        support = support.reshape(bs, n_way, d)
        query = query.reshape(bs, n_way, d)

        support_labels = jnp.tile(jnp.arange(n_way, dtype=jnp.int32)[None, :], (bs, 1))
        query_labels = jnp.tile(jnp.arange(n_way, dtype=jnp.int32)[None, :], (bs, 1))

        # Deterministic stand-in for torch.rand(...).argsort() row shuffles.
        k1, k2 = jax.random.split(perm_key)
        rand_supp = jnp.argsort(jax.random.uniform(k1, (bs, n_way)), axis=1)
        rand_query = jnp.argsort(jax.random.uniform(k2, (bs, n_way)), axis=1)
        support = jnp.take_along_axis(support, rand_supp[:, :, None], axis=1)
        support_labels = jnp.take_along_axis(support_labels, rand_supp, axis=1)
        query = jnp.take_along_axis(query, rand_query[:, :, None], axis=1)
        query_labels = jnp.take_along_axis(query_labels, rand_query, axis=1)

        supp_oh = jax.nn.one_hot(support_labels, n_way, dtype=jnp.float32)
        query_oh = jax.nn.one_hot(query_labels, n_way, dtype=jnp.float32)

        loss, acc = ntxent_svm_pallas(
            support.astype(jnp.float32), query.astype(jnp.float32),
            supp_oh, query_oh, tau=self.tau, c_reg=0.1)
        return jnp.mean(loss), jnp.mean(acc)


if __name__ == "__main__":
    key = jax.random.PRNGKey(0)
    kz, kperm = jax.random.split(key)

    # Small shapes: bs=2 tasks, multiplier=2 (1 support + 1 query view),
    # n_way=8 per task, D=32  ->  N = 2*2*8 = 32 embeddings of dim 32.
    bs, n_way, D, multiplier = 2, 8, 32, 2
    N = multiplier * bs * n_way
    z = jax.random.normal(kz, (N, D), dtype=jnp.float32)

    model = NTXentSVMPallas(bs=bs, n_supp=1, n_query=1, tau=1.0, multiplier=multiplier)
    loss, acc = model(z, kperm)
    jax.block_until_ready((loss, acc))
    print("KERNEL_OK")
</pallas_src>

<mosaic_0001>
module attributes {stable_mosaic.version = 11 : i64} {
  func.func @_ntxent_svm_kernel(%arg0: i32, %arg1: memref<1x16x32xf32, #tpu.memory_space<vmem>>, %arg2: memref<1x16x32xf32, #tpu.memory_space<vmem>>, %arg3: memref<1x8x16xf32, #tpu.memory_space<vmem>>, %arg4: memref<1x8x16xf32, #tpu.memory_space<vmem>>, %arg5: memref<16x16xf32, #tpu.memory_space<vmem>>, %arg6: memref<1x1x16xf32, #tpu.memory_space<vmem>>, %arg7: memref<1x1x16xf32, #tpu.memory_space<vmem>>) attributes {dimension_semantics = [#tpu.dimension_semantics<parallel>], iteration_bounds = array<i64: 1>, scalar_prefetch = 0 : i64, scratch_operands = 0 : i64, tpu.core_type = #tpu.core_type<tc>, window_params = [{transform_indices = @transform_0, window_bounds = array<i64: 1, 16, 32>}, {transform_indices = @transform_1, window_bounds = array<i64: 1, 16, 32>}, {transform_indices = @transform_2, window_bounds = array<i64: 1, 8, 16>}, {transform_indices = @transform_3, window_bounds = array<i64: 1, 8, 16>}, {pipeline_mode = #tpu.pipeline_mode<synchronous>, transform_indices = @transform_4, window_bounds = array<i64: 16, 16>}, {transform_indices = @transform_5, window_bounds = array<i64: 1, 1, 16>}, {transform_indices = @transform_6, window_bounds = array<i64: 1, 1, 16>}]} {
    %c0 = arith.constant 0 : index
    %c0_0 = arith.constant 0 : index
    %c0_1 = arith.constant 0 : index
    %0 = vector.load %arg1[%c0, %c0_0, %c0_1] : memref<1x16x32xf32, #tpu.memory_space<vmem>>, vector<1x16x32xf32>
    %1 = vector.shape_cast %0 : vector<1x16x32xf32> to vector<16x32xf32>
    %c0_2 = arith.constant 0 : index
    %c0_3 = arith.constant 0 : index
    %c0_4 = arith.constant 0 : index
    %2 = vector.load %arg2[%c0_2, %c0_3, %c0_4] : memref<1x16x32xf32, #tpu.memory_space<vmem>>, vector<1x16x32xf32>
    %3 = vector.shape_cast %2 : vector<1x16x32xf32> to vector<16x32xf32>
    %c0_5 = arith.constant 0 : index
    %c0_6 = arith.constant 0 : index
    %c0_7 = arith.constant 0 : index
    %4 = vector.load %arg3[%c0_5, %c0_6, %c0_7] : memref<1x8x16xf32, #tpu.memory_space<vmem>>, vector<1x8x16xf32>
    %5 = vector.shape_cast %4 : vector<1x8x16xf32> to vector<8x16xf32>
    %c0_8 = arith.constant 0 : index
    %c0_9 = arith.constant 0 : index
    %c0_10 = arith.constant 0 : index
    %6 = vector.load %arg4[%c0_8, %c0_9, %c0_10] : memref<1x8x16xf32, #tpu.memory_space<vmem>>, vector<1x8x16xf32>
    %7 = vector.shape_cast %6 : vector<1x8x16xf32> to vector<8x16xf32>
    %c0_11 = arith.constant 0 : index
    %c0_12 = arith.constant 0 : index
    %8 = vector.load %arg5[%c0_11, %c0_12] : memref<16x16xf32, #tpu.memory_space<vmem>>, vector<16x16xf32>
    %9 = arith.mulf %1, %1 : vector<16x32xf32>
    %cst = arith.constant dense<0.000000e+00> : vector<16xf32>
    %10 = vector.multi_reduction <add>, %9, %cst [1] : vector<16x32xf32> to vector<16xf32>
    %11 = vector.shape_cast %10 : vector<16xf32> to vector<16x1xf32>
    %12 = math.sqrt %11 : vector<16x1xf32>
    %cst_13 = arith.constant 9.99999996E-13 : f32
    %13 = vector.broadcast %cst_13 : f32 to vector<16x1xf32>
    %14 = arith.maximumf %12, %13 : vector<16x1xf32>
    %15 = vector.broadcast %14 : vector<16x1xf32> to vector<16x32xf32>
    %16 = arith.divf %1, %15 : vector<16x32xf32>
    %17 = arith.mulf %3, %3 : vector<16x32xf32>
    %cst_14 = arith.constant dense<0.000000e+00> : vector<16xf32>
    %18 = vector.multi_reduction <add>, %17, %cst_14 [1] : vector<16x32xf32> to vector<16xf32>
    %19 = vector.shape_cast %18 : vector<16xf32> to vector<16x1xf32>
    %20 = math.sqrt %19 : vector<16x1xf32>
    %cst_15 = arith.constant 9.99999996E-13 : f32
    %21 = vector.broadcast %cst_15 : f32 to vector<16x1xf32>
    %22 = arith.maximumf %20, %21 : vector<16x1xf32>
    %23 = vector.broadcast %22 : vector<16x1xf32> to vector<16x32xf32>
    %24 = arith.divf %3, %23 : vector<16x32xf32>
    %25 = tpu.iota {dimensions = array<i32: 0>} : vector<16x16xi32>
    %26 = tpu.iota {dimensions = array<i32: 1>} : vector<16x16xi32>
    %27 = arith.cmpi eq, %25, %26 : vector<16x16xi32>
    %28 = arith.extui %27 : vector<16x16xi1> to vector<16x16xi32>
    %29 = arith.sitofp %28 : vector<16x16xi32> to vector<16x16xf32>
    %30 = tpu.concatenate %16, %24 in 0 : vector<16x32xf32>, vector<16x32xf32> -> vector<32x32xf32>
    "tpu.trace_start"() <{level = 10 : i32, message = "pd,qd->pq"}> : () -> ()
    %cst_16 = arith.constant dense<0.000000e+00> : vector<16x32xf32>
    %31 = tpu.matmul %16, %30, %cst_16 {dimension_numbers = #tpu.dot_dimension_numbers<[1], [1], [0], [0], [0, 0, 1, 0], [], []>} : vector<16x32xf32>, vector<32x32xf32>, vector<16x32xf32> -> vector<16x32xf32>
    "tpu.trace_stop"() : () -> ()
    %32 = vector.extract_strided_slice %31 {offsets = [0, 0], sizes = [16, 16], strides = [1, 1]} : vector<16x32xf32> to vector<16x16xf32>
    %33 = arith.mulf %32, %8 : vector<16x16xf32>
    %34 = vector.extract_strided_slice %31 {offsets = [0, 16], sizes = [16, 16], strides = [1, 1]} : vector<16x32xf32> to vector<16x16xf32>
    %35 = arith.mulf %34, %8 : vector<16x16xf32>
    %cst_17 = arith.constant 1.000000e-01 : f32
    %36 = vector.broadcast %cst_17 : f32 to vector<8x16xf32>
    %37 = arith.mulf %36, %5 : vector<8x16xf32>
    %38 = math.absf %33 : vector<16x16xf32>
    %cst_18 = arith.constant dense<0.000000e+00> : vector<16xf32>
    %39 = vector.multi_reduction <add>, %38, %cst_18 [0] : vector<16x16xf32> to vector<16xf32>
    %40 = vector.shape_cast %39 : vector<16xf32> to vector<1x16xf32>
    %cst_19 = arith.constant dense<0xFF800000> : vector<1xf32>
    %41 = vector.multi_reduction <maximumf>, %40, %cst_19 [1] : vector<1x16xf32> to vector<1xf32>
    %42 = vector.shape_cast %41 : vector<1xf32> to vector<1x1xf32>
    %cst_20 = arith.constant 1.000000e+00 : f32
    %43 = vector.broadcast %cst_20 : f32 to vector<1x1xf32>
    %44 = arith.addf %43, %42 : vector<1x1xf32>
    %cst_21 = arith.constant 1.000000e+00 : f32
    %45 = vector.broadcast %cst_21 : f32 to vector<1x1xf32>
    %46 = arith.divf %45, %44 : vector<1x1xf32>
    %cst_22 = arith.constant 1.000000e+00 : f32
    %47 = vector.broadcast %cst_22 : f32 to vector<1x1xf32>
    %48 = arith.subf %47, %46 : vector<1x1xf32>
    %49 = vector.broadcast %48 : vector<1x1xf32> to vector<16x16xf32>
    %50 = arith.mulf %49, %29 : vector<16x16xf32>
    %51 = vector.broadcast %46 : vector<1x1xf32> to vector<16x16xf32>
    %52 = arith.mulf %51, %33 : vector<16x16xf32>
    %53 = arith.subf %50, %52 : vector<16x16xf32>
    %54 = arith.truncf %53 : vector<16x16xf32> to vector<16x16xbf16>
    %55 = vector.broadcast %46 : vector<1x1xf32> to vector<8x16xf32>
    %56 = arith.mulf %55, %5 : vector<8x16xf32>
    %cst_23 = arith.constant 0.000000e+00 : f32
    %57 = vector.broadcast %cst_23 : f32 to vector<8x16xf32>
    %c0_i32 = arith.constant 0 : i32
    %c42_i32 = arith.constant 42 : i32
    %58 = arith.addi %c0_i32, %c42_i32 : i32
    %c1_i32 = arith.constant 1 : i32
    %59:2 = scf.for %arg8 = %c0_i32 to %58 step %c1_i32 iter_args(%arg9 = %57, %arg10 = %57) -> (vector<8x16xf32>, vector<8x16xf32>)  : i32 {
      %99 = arith.truncf %arg10 : vector<8x16xf32> to vector<8x16xbf16>
      %cst_40 = arith.constant dense<0.000000e+00> : vector<8x16xf32>
      %100 = tpu.matmul %99, %54, %cst_40 {dimension_numbers = #tpu.dot_dimension_numbers<[1], [0], [0], [1], [0, 0, 1, 1], [], []>} : vector<8x16xbf16>, vector<16x16xbf16>, vector<8x16xf32> -> vector<8x16xf32>
      %101 = arith.addf %100, %56 : vector<8x16xf32>
      %102 = arith.subf %101, %37 : vector<8x16xf32>
      %cst_41 = arith.constant dense<0x7F800000> : vector<16xf32>
      %103 = vector.multi_reduction <minimumf>, %102, %cst_41 [0] : vector<8x16xf32> to vector<16xf32>
      %104 = vector.shape_cast %103 : vector<16xf32> to vector<1x16xf32>
      %cst_42 = arith.constant dense<0xFF800000> : vector<16xf32>
      %105 = vector.multi_reduction <maximumf>, %101, %cst_42 [0] : vector<8x16xf32> to vector<16xf32>
      %106 = vector.shape_cast %105 : vector<16xf32> to vector<1x16xf32>
      %cst_43 = arith.constant dense<0.000000e+00> : vector<16xf32>
      %107 = vector.multi_reduction <add>, %101, %cst_43 [0] : vector<8x16xf32> to vector<16xf32>
      %108 = vector.shape_cast %107 : vector<16xf32> to vector<1x16xf32>
      %cst_44 = arith.constant 8.000000e+00 : f32
      %109 = vector.broadcast %cst_44 : f32 to vector<1x16xf32>
      %110 = arith.divf %108, %109 : vector<1x16xf32>
      %111 = arith.maximumf %104, %110 : vector<1x16xf32>
      %112 = arith.minimumf %106, %111 : vector<1x16xf32>
      %c0_i32_45 = arith.constant 0 : i32
      %113 = vector.broadcast %112 : vector<1x16xf32> to vector<8x16xf32>
      %114 = arith.subf %101, %113 : vector<8x16xf32>
      %115 = arith.minimumf %114, %37 : vector<8x16xf32>
      %116 = arith.cmpf olt, %114, %37 : vector<8x16xf32>
      %117 = arith.extui %116 : vector<8x16xi1> to vector<8x16xi32>
      %118 = arith.sitofp %117 : vector<8x16xi32> to vector<8x16xf32>
      %119 = tpu.concatenate %115, %118 in 1 : vector<8x16xf32>, vector<8x16xf32> -> vector<8x32xf32>
      %cst_46 = arith.constant dense<0.000000e+00> : vector<32xf32>
      %120 = vector.multi_reduction <add>, %119, %cst_46 [0] : vector<8x32xf32> to vector<32xf32>
      %121 = vector.shape_cast %120 : vector<32xf32> to vector<1x32xf32>
      %122 = vector.extract_strided_slice %121 {offsets = [0, 0], sizes = [1, 16], strides = [1, 1]} : vector<1x32xf32> to vector<1x16xf32>
      %123 = vector.extract_strided_slice %121 {offsets = [0, 16], sizes = [1, 16], strides = [1, 1]} : vector<1x32xf32> to vector<1x16xf32>
      %cst_47 = arith.constant 0.000000e+00 : f32
      %124 = vector.broadcast %cst_47 : f32 to vector<1x16xf32>
      %125 = arith.cmpf ogt, %122, %124 : vector<1x16xf32>
      %126 = arith.select %125, %112, %104 : vector<1x16xi1>, vector<1x16xf32>
      %cst_48 = arith.constant 0.000000e+00 : f32
      %127 = vector.broadcast %cst_48 : f32 to vector<1x16xf32>
      %128 = arith.cmpf ogt, %122, %127 : vector<1x16xf32>
      %129 = arith.select %128, %106, %112 : vector<1x16xi1>, vector<1x16xf32>
      %cst_49 = arith.constant 5.000000e-01 : f32
      %130 = vector.broadcast %cst_49 : f32 to vector<1x16xf32>
      %131 = arith.cmpf ogt, %123, %130 : vector<1x16xf32>
      %cst_50 = arith.constant 1.000000e+00 : f32
      %132 = vector.broadcast %cst_50 : f32 to vector<1x16xf32>
      %133 = arith.maximumf %123, %132 : vector<1x16xf32>
      %134 = arith.divf %122, %133 : vector<1x16xf32>
      %135 = arith.addf %112, %134 : vector<1x16xf32>
      %136 = arith.addf %126, %129 : vector<1x16xf32>
      %cst_51 = arith.constant 5.000000e-01 : f32
      %137 = vector.broadcast %cst_51 : f32 to vector<1x16xf32>
      %138 = arith.mulf %137, %136 : vector<1x16xf32>
      %139 = arith.select %131, %135, %138 : vector<1x16xi1>, vector<1x16xf32>
      %140 = arith.maximumf %126, %139 : vector<1x16xf32>
      %141 = arith.minimumf %129, %140 : vector<1x16xf32>
      %c1_i32_52 = arith.constant 1 : i32
      %142 = vector.broadcast %141 : vector<1x16xf32> to vector<8x16xf32>
      %143 = arith.subf %101, %142 : vector<8x16xf32>
      %144 = arith.minimumf %143, %37 : vector<8x16xf32>
      %145 = arith.cmpf olt, %143, %37 : vector<8x16xf32>
      %146 = arith.extui %145 : vector<8x16xi1> to vector<8x16xi32>
      %147 = arith.sitofp %146 : vector<8x16xi32> to vector<8x16xf32>
      %148 = tpu.concatenate %144, %147 in 1 : vector<8x16xf32>, vector<8x16xf32> -> vector<8x32xf32>
      %cst_53 = arith.constant dense<0.000000e+00> : vector<32xf32>
      %149 = vector.multi_reduction <add>, %148, %cst_53 [0] : vector<8x32xf32> to vector<32xf32>
      %150 = vector.shape_cast %149 : vector<32xf32> to vector<1x32xf32>
      %151 = vector.extract_strided_slice %150 {offsets = [0, 0], sizes = [1, 16], strides = [1, 1]} : vector<1x32xf32> to vector<1x16xf32>
      %152 = vector.extract_strided_slice %150 {offsets = [0, 16], sizes = [1, 16], strides = [1, 1]} : vector<1x32xf32> to vector<1x16xf32>
      %cst_54 = arith.constant 0.000000e+00 : f32
      %153 = vector.broadcast %cst_54 : f32 to vector<1x16xf32>
      %154 = arith.cmpf ogt, %151, %153 : vector<1x16xf32>
      %155 = arith.select %154, %141, %126 : vector<1x16xi1>, vector<1x16xf32>
      %cst_55 = arith.constant 0.000000e+00 : f32
      %156 = vector.broadcast %cst_55 : f32 to vector<1x16xf32>
      %157 = arith.cmpf ogt, %151, %156 : vector<1x16xf32>
      %158 = arith.select %157, %129, %141 : vector<1x16xi1>, vector<1x16xf32>
      %cst_56 = arith.constant 5.000000e-01 : f32
      %159 = vector.broadcast %cst_56 : f32 to vector<1x16xf32>
      %160 = arith.cmpf ogt, %152, %159 : vector<1x16xf32>
      %cst_57 = arith.constant 1.000000e+00 : f32
      %161 = vector.broadcast %cst_57 : f32 to vector<1x16xf32>
      %162 = arith.maximumf %152, %161 : vector<1x16xf32>
      %163 = arith.divf %151, %162 : vector<1x16xf32>
      %164 = arith.addf %141, %163 : vector<1x16xf32>
      %165 = arith.addf %155, %158 : vector<1x16xf32>
      %cst_58 = arith.constant 5.000000e-01 : f32
      %166 = vector.broadcast %cst_58 : f32 to vector<1x16xf32>
      %167 = arith.mulf %166, %165 : vector<1x16xf32>
      %168 = arith.select %160, %164, %167 : vector<1x16xi1>, vector<1x16xf32>
      %169 = arith.maximumf %155, %168 : vector<1x16xf32>
      %170 = arith.minimumf %158, %169 : vector<1x16xf32>
      %c2_i32 = arith.constant 2 : i32
      %171 = vector.broadcast %170 : vector<1x16xf32> to vector<8x16xf32>
      %172 = arith.subf %101, %171 : vector<8x16xf32>
      %173 = arith.minimumf %172, %37 : vector<8x16xf32>
      %174 = arith.cmpf olt, %172, %37 : vector<8x16xf32>
      %175 = arith.extui %174 : vector<8x16xi1> to vector<8x16xi32>
      %176 = arith.sitofp %175 : vector<8x16xi32> to vector<8x16xf32>
      %177 = tpu.concatenate %173, %176 in 1 : vector<8x16xf32>, vector<8x16xf32> -> vector<8x32xf32>
      %cst_59 = arith.constant dense<0.000000e+00> : vector<32xf32>
      %178 = vector.multi_reduction <add>, %177, %cst_59 [0] : vector<8x32xf32> to vector<32xf32>
      %179 = vector.shape_cast %178 : vector<32xf32> to vector<1x32xf32>
      %180 = vector.extract_strided_slice %179 {offsets = [0, 0], sizes = [1, 16], strides = [1, 1]} : vector<1x32xf32> to vector<1x16xf32>
      %181 = vector.extract_strided_slice %179 {offsets = [0, 16], sizes = [1, 16], strides = [1, 1]} : vector<1x32xf32> to vector<1x16xf32>
      %cst_60 = arith.constant 0.000000e+00 : f32
      %182 = vector.broadcast %cst_60 : f32 to vector<1x16xf32>
      %183 = arith.cmpf ogt, %180, %182 : vector<1x16xf32>
      %184 = arith.select %183, %170, %155 : vector<1x16xi1>, vector<1x16xf32>
      %cst_61 = arith.constant 0.000000e+00 : f32
      %185 = vector.broadcast %cst_61 : f32 to vector<1x16xf32>
      %186 = arith.cmpf ogt, %180, %185 : vector<1x16xf32>
      %187 = arith.select %186, %158, %170 : vector<1x16xi1>, vector<1x16xf32>
      %cst_62 = arith.constant 5.000000e-01 : f32
      %188 = vector.broadcast %cst_62 : f32 to vector<1x16xf32>
      %189 = arith.cmpf ogt, %181, %188 : vector<1x16xf32>
      %cst_63 = arith.constant 1.000000e+00 : f32
      %190 = vector.broadcast %cst_63 : f32 to vector<1x16xf32>
      %191 = arith.maximumf %181, %190 : vector<1x16xf32>
      %192 = arith.divf %180, %191 : vector<1x16xf32>
      %193 = arith.addf %170, %192 : vector<1x16xf32>
      %194 = arith.addf %184, %187 : vector<1x16xf32>
      %cst_64 = arith.constant 5.000000e-01 : f32
      %195 = vector.broadcast %cst_64 : f32 to vector<1x16xf32>
      %196 = arith.mulf %195, %194 : vector<1x16xf32>
      %197 = arith.select %189, %193, %196 : vector<1x16xi1>, vector<1x16xf32>
      %198 = arith.maximumf %184, %197 : vector<1x16xf32>
      %199 = arith.minimumf %187, %198 : vector<1x16xf32>
      %c3_i32 = arith.constant 3 : i32
      %200 = vector.broadcast %199 : vector<1x16xf32> to vector<8x16xf32>
      %201 = arith.subf %101, %200 : vector<8x16xf32>
      %202 = arith.minimumf %201, %37 : vector<8x16xf32>
      %203 = arith.cmpf olt, %201, %37 : vector<8x16xf32>
      %204 = arith.extui %203 : vector<8x16xi1> to vector<8x16xi32>
      %205 = arith.sitofp %204 : vector<8x16xi32> to vector<8x16xf32>
      %206 = tpu.concatenate %202, %205 in 1 : vector<8x16xf32>, vector<8x16xf32> -> vector<8x32xf32>
      %cst_65 = arith.constant dense<0.000000e+00> : vector<32xf32>
      %207 = vector.multi_reduction <add>, %206, %cst_65 [0] : vector<8x32xf32> to vector<32xf32>
      %208 = vector.shape_cast %207 : vector<32xf32> to vector<1x32xf32>
      %209 = vector.extract_strided_slice %208 {offsets = [0, 0], sizes = [1, 16], strides = [1, 1]} : vector<1x32xf32> to vector<1x16xf32>
      %210 = vector.extract_strided_slice %208 {offsets = [0, 16], sizes = [1, 16], strides = [1, 1]} : vector<1x32xf32> to vector<1x16xf32>
      %cst_66 = arith.constant 0.000000e+00 : f32
      %211 = vector.broadcast %cst_66 : f32 to vector<1x16xf32>
      %212 = arith.cmpf ogt, %209, %211 : vector<1x16xf32>
      %213 = arith.select %212, %199, %184 : vector<1x16xi1>, vector<1x16xf32>
      %cst_67 = arith.constant 0.000000e+00 : f32
      %214 = vector.broadcast %cst_67 : f32 to vector<1x16xf32>
      %215 = arith.cmpf ogt, %209, %214 : vector<1x16xf32>
      %216 = arith.select %215, %187, %199 : vector<1x16xi1>, vector<1x16xf32>
      %cst_68 = arith.constant 5.000000e-01 : f32
      %217 = vector.broadcast %cst_68 : f32 to vector<1x16xf32>
      %218 = arith.cmpf ogt, %210, %217 : vector<1x16xf32>
      %cst_69 = arith.constant 1.000000e+00 : f32
      %219 = vector.broadcast %cst_69 : f32 to vector<1x16xf32>
      %220 = arith.maximumf %210, %219 : vector<1x16xf32>
      %221 = arith.divf %209, %220 : vector<1x16xf32>
      %222 = arith.addf %199, %221 : vector<1x16xf32>
      %223 = arith.addf %213, %216 : vector<1x16xf32>
      %cst_70 = arith.constant 5.000000e-01 : f32
      %224 = vector.broadcast %cst_70 : f32 to vector<1x16xf32>
      %225 = arith.mulf %224, %223 : vector<1x16xf32>
      %226 = arith.select %218, %222, %225 : vector<1x16xi1>, vector<1x16xf32>
      %227 = arith.maximumf %213, %226 : vector<1x16xf32>
      %228 = arith.minimumf %216, %227 : vector<1x16xf32>
      %c4_i32 = arith.constant 4 : i32
      %229 = vector.broadcast %228 : vector<1x16xf32> to vector<8x16xf32>
      %230 = arith.subf %101, %229 : vector<8x16xf32>
      %231 = arith.minimumf %230, %37 : vector<8x16xf32>
      %232 = arith.cmpf olt, %230, %37 : vector<8x16xf32>
      %233 = arith.extui %232 : vector<8x16xi1> to vector<8x16xi32>
      %234 = arith.sitofp %233 : vector<8x16xi32> to vector<8x16xf32>
      %235 = tpu.concatenate %231, %234 in 1 : vector<8x16xf32>, vector<8x16xf32> -> vector<8x32xf32>
      %cst_71 = arith.constant dense<0.000000e+00> : vector<32xf32>
      %236 = vector.multi_reduction <add>, %235, %cst_71 [0] : vector<8x32xf32> to vector<32xf32>
      %237 = vector.shape_cast %236 : vector<32xf32> to vector<1x32xf32>
      %238 = vector.extract_strided_slice %237 {offsets = [0, 0], sizes = [1, 16], strides = [1, 1]} : vector<1x32xf32> to vector<1x16xf32>
      %239 = vector.extract_strided_slice %237 {offsets = [0, 16], sizes = [1, 16], strides = [1, 1]} : vector<1x32xf32> to vector<1x16xf32>
      %cst_72 = arith.constant 0.000000e+00 : f32
      %240 = vector.broadcast %cst_72 : f32 to vector<1x16xf32>
      %241 = arith.cmpf ogt, %238, %240 : vector<1x16xf32>
      %242 = arith.select %241, %228, %213 : vector<1x16xi1>, vector<1x16xf32>
      %cst_73 = arith.constant 0.000000e+00 : f32
      %243 = vector.broadcast %cst_73 : f32 to vector<1x16xf32>
      %244 = arith.cmpf ogt, %238, %243 : vector<1x16xf32>
      %245 = arith.select %244, %216, %228 : vector<1x16xi1>, vector<1x16xf32>
      %cst_74 = arith.constant 5.000000e-01 : f32
      %246 = vector.broadcast %cst_74 : f32 to vector<1x16xf32>
      %247 = arith.cmpf ogt, %239, %246 : vector<1x16xf32>
      %cst_75 = arith.constant 1.000000e+00 : f32
      %248 = vector.broadcast %cst_75 : f32 to vector<1x16xf32>
      %249 = arith.maximumf %239, %248 : vector<1x16xf32>
      %250 = arith.divf %238, %249 : vector<1x16xf32>
      %251 = arith.addf %228, %250 : vector<1x16xf32>
      %252 = arith.addf %242, %245 : vector<1x16xf32>
      %cst_76 = arith.constant 5.000000e-01 : f32
      %253 = vector.broadcast %cst_76 : f32 to vector<1x16xf32>
      %254 = arith.mulf %253, %252 : vector<1x16xf32>
      %255 = arith.select %247, %251, %254 : vector<1x16xi1>, vector<1x16xf32>
      %256 = arith.maximumf %242, %255 : vector<1x16xf32>
      %257 = arith.minimumf %245, %256 : vector<1x16xf32>
      %c5_i32 = arith.constant 5 : i32
      %258 = vector.broadcast %257 : vector<1x16xf32> to vector<8x16xf32>
      %259 = arith.subf %101, %258 : vector<8x16xf32>
      %260 = arith.minimumf %259, %37 : vector<8x16xf32>
      %261 = arith.cmpf olt, %259, %37 : vector<8x16xf32>
      %262 = arith.extui %261 : vector<8x16xi1> to vector<8x16xi32>
      %263 = arith.sitofp %262 : vector<8x16xi32> to vector<8x16xf32>
      %264 = tpu.concatenate %260, %263 in 1 : vector<8x16xf32>, vector<8x16xf32> -> vector<8x32xf32>
      %cst_77 = arith.constant dense<0.000000e+00> : vector<32xf32>
      %265 = vector.multi_reduction <add>, %264, %cst_77 [0] : vector<8x32xf32> to vector<32xf32>
      %266 = vector.shape_cast %265 : vector<32xf32> to vector<1x32xf32>
      %267 = vector.extract_strided_slice %266 {offsets = [0, 0], sizes = [1, 16], strides = [1, 1]} : vector<1x32xf32> to vector<1x16xf32>
      %268 = vector.extract_strided_slice %266 {offsets = [0, 16], sizes = [1, 16], strides = [1, 1]} : vector<1x32xf32> to vector<1x16xf32>
      %cst_78 = arith.constant 0.000000e+00 : f32
      %269 = vector.broadcast %cst_78 : f32 to vector<1x16xf32>
      %270 = arith.cmpf ogt, %267, %269 : vector<1x16xf32>
      %271 = arith.select %270, %257, %242 : vector<1x16xi1>, vector<1x16xf32>
      %cst_79 = arith.constant 0.000000e+00 : f32
      %272 = vector.broadcast %cst_79 : f32 to vector<1x16xf32>
      %273 = arith.cmpf ogt, %267, %272 : vector<1x16xf32>
      %274 = arith.select %273, %245, %257 : vector<1x16xi1>, vector<1x16xf32>
      %cst_80 = arith.constant 5.000000e-01 : f32
      %275 = vector.broadcast %cst_80 : f32 to vector<1x16xf32>
      %276 = arith.cmpf ogt, %268, %275 : vector<1x16xf32>
      %cst_81 = arith.constant 1.000000e+00 : f32
      %277 = vector.broadcast %cst_81 : f32 to vector<1x16xf32>
      %278 = arith.maximumf %268, %277 : vector<1x16xf32>
      %279 = arith.divf %267, %278 : vector<1x16xf32>
      %280 = arith.addf %257, %279 : vector<1x16xf32>
      %281 = arith.addf %271, %274 : vector<1x16xf32>
      %cst_82 = arith.constant 5.000000e-01 : f32
      %282 = vector.broadcast %cst_82 : f32 to vector<1x16xf32>
      %283 = arith.mulf %282, %281 : vector<1x16xf32>
      %284 = arith.select %276, %280, %283 : vector<1x16xi1>, vector<1x16xf32>
      %285 = arith.maximumf %271, %284 : vector<1x16xf32>
      %286 = arith.minimumf %274, %285 : vector<1x16xf32>
      %c6_i32 = arith.constant 6 : i32
      %287 = vector.broadcast %286 : vector<1x16xf32> to vector<8x16xf32>
      %288 = arith.subf %101, %287 : vector<8x16xf32>
      %289 = arith.minimumf %288, %37 : vector<8x16xf32>
      %290 = arith.cmpf olt, %288, %37 : vector<8x16xf32>
      %291 = arith.extui %290 : vector<8x16xi1> to vector<8x16xi32>
      %292 = arith.sitofp %291 : vector<8x16xi32> to vector<8x16xf32>
      %293 = tpu.concatenate %289, %292 in 1 : vector<8x16xf32>, vector<8x16xf32> -> vector<8x32xf32>
      %cst_83 = arith.constant dense<0.000000e+00> : vector<32xf32>
      %294 = vector.multi_reduction <add>, %293, %cst_83 [0] : vector<8x32xf32> to vector<32xf32>
      %295 = vector.shape_cast %294 : vector<32xf32> to vector<1x32xf32>
      %296 = vector.extract_strided_slice %295 {offsets = [0, 0], sizes = [1, 16], strides = [1, 1]} : vector<1x32xf32> to vector<1x16xf32>
      %297 = vector.extract_strided_slice %295 {offsets = [0, 16], sizes = [1, 16], strides = [1, 1]} : vector<1x32xf32> to vector<1x16xf32>
      %cst_84 = arith.constant 0.000000e+00 : f32
      %298 = vector.broadcast %cst_84 : f32 to vector<1x16xf32>
      %299 = arith.cmpf ogt, %296, %298 : vector<1x16xf32>
      %300 = arith.select %299, %286, %271 : vector<1x16xi1>, vector<1x16xf32>
      %cst_85 = arith.constant 0.000000e+00 : f32
      %301 = vector.broadcast %cst_85 : f32 to vector<1x16xf32>
      %302 = arith.cmpf ogt, %296, %301 : vector<1x16xf32>
      %303 = arith.select %302, %274, %286 : vector<1x16xi1>, vector<1x16xf32>
      %cst_86 = arith.constant 5.000000e-01 : f32
      %304 = vector.broadcast %cst_86 : f32 to vector<1x16xf32>
      %305 = arith.cmpf ogt, %297, %304 : vector<1x16xf32>
      %cst_87 = arith.constant 1.000000e+00 : f32
      %306 = vector.broadcast %cst_87 : f32 to vector<1x16xf32>
      %307 = arith.maximumf %297, %306 : vector<1x16xf32>
      %308 = arith.divf %296, %307 : vector<1x16xf32>
      %309 = arith.addf %286, %308 : vector<1x16xf32>
      %310 = arith.addf %300, %303 : vector<1x16xf32>
      %cst_88 = arith.constant 5.000000e-01 : f32
      %311 = vector.broadcast %cst_88 : f32 to vector<1x16xf32>
      %312 = arith.mulf %311, %310 : vector<1x16xf32>
      %313 = arith.select %305, %309, %312 : vector<1x16xi1>, vector<1x16xf32>
      %314 = arith.maximumf %300, %313 : vector<1x16xf32>
      %315 = arith.minimumf %303, %314 : vector<1x16xf32>
      %c7_i32 = arith.constant 7 : i32
      %316 = vector.broadcast %315 : vector<1x16xf32> to vector<8x16xf32>
      %317 = arith.subf %101, %316 : vector<8x16xf32>
      %318 = arith.minimumf %317, %37 : vector<8x16xf32>
      %319 = arith.cmpf olt, %317, %37 : vector<8x16xf32>
      %320 = arith.extui %319 : vector<8x16xi1> to vector<8x16xi32>
      %321 = arith.sitofp %320 : vector<8x16xi32> to vector<8x16xf32>
      %322 = tpu.concatenate %318, %321 in 1 : vector<8x16xf32>, vector<8x16xf32> -> vector<8x32xf32>
      %cst_89 = arith.constant dense<0.000000e+00> : vector<32xf32>
      %323 = vector.multi_reduction <add>, %322, %cst_89 [0] : vector<8x32xf32> to vector<32xf32>
      %324 = vector.shape_cast %323 : vector<32xf32> to vector<1x32xf32>
      %325 = vector.extract_strided_slice %324 {offsets = [0, 0], sizes = [1, 16], strides = [1, 1]} : vector<1x32xf32> to vector<1x16xf32>
      %326 = vector.extract_strided_slice %324 {offsets = [0, 16], sizes = [1, 16], strides = [1, 1]} : vector<1x32xf32> to vector<1x16xf32>
      %cst_90 = arith.constant 0.000000e+00 : f32
      %327 = vector.broadcast %cst_90 : f32 to vector<1x16xf32>
      %328 = arith.cmpf ogt, %325, %327 : vector<1x16xf32>
      %329 = arith.select %328, %315, %300 : vector<1x16xi1>, vector<1x16xf32>
      %cst_91 = arith.constant 0.000000e+00 : f32
      %330 = vector.broadcast %cst_91 : f32 to vector<1x16xf32>
      %331 = arith.cmpf ogt, %325, %330 : vector<1x16xf32>
      %332 = arith.select %331, %303, %315 : vector<1x16xi1>, vector<1x16xf32>
      %cst_92 = arith.constant 5.000000e-01 : f32
      %333 = vector.broadcast %cst_92 : f32 to vector<1x16xf32>
      %334 = arith.cmpf ogt, %326, %333 : vector<1x16xf32>
      %cst_93 = arith.constant 1.000000e+00 : f32
      %335 = vector.broadcast %cst_93 : f32 to vector<1x16xf32>
      %336 = arith.maximumf %326, %335 : vector<1x16xf32>
      %337 = arith.divf %325, %336 : vector<1x16xf32>
      %338 = arith.addf %315, %337 : vector<1x16xf32>
      %339 = arith.addf %329, %332 : vector<1x16xf32>
      %cst_94 = arith.constant 5.000000e-01 : f32
      %340 = vector.broadcast %cst_94 : f32 to vector<1x16xf32>
      %341 = arith.mulf %340, %339 : vector<1x16xf32>
      %342 = arith.select %334, %338, %341 : vector<1x16xi1>, vector<1x16xf32>
      %343 = arith.maximumf %329, %342 : vector<1x16xf32>
      %344 = arith.minimumf %332, %343 : vector<1x16xf32>
      %c8_i32 = arith.constant 8 : i32
      %345 = vector.broadcast %344 : vector<1x16xf32> to vector<8x16xf32>
      %346 = arith.subf %101, %345 : vector<8x16xf32>
      %347 = arith.minimumf %346, %37 : vector<8x16xf32>
      %348 = arith.cmpf olt, %346, %37 : vector<8x16xf32>
      %349 = arith.extui %348 : vector<8x16xi1> to vector<8x16xi32>
      %350 = arith.sitofp %349 : vector<8x16xi32> to vector<8x16xf32>
      %351 = tpu.concatenate %347, %350 in 1 : vector<8x16xf32>, vector<8x16xf32> -> vector<8x32xf32>
      %cst_95 = arith.constant dense<0.000000e+00> : vector<32xf32>
      %352 = vector.multi_reduction <add>, %351, %cst_95 [0] : vector<8x32xf32> to vector<32xf32>
      %353 = vector.shape_cast %352 : vector<32xf32> to vector<1x32xf32>
      %354 = vector.extract_strided_slice %353 {offsets = [0, 0], sizes = [1, 16], strides = [1, 1]} : vector<1x32xf32> to vector<1x16xf32>
      %355 = vector.extract_strided_slice %353 {offsets = [0, 16], sizes = [1, 16], strides = [1, 1]} : vector<1x32xf32> to vector<1x16xf32>
      %cst_96 = arith.constant 0.000000e+00 : f32
      %356 = vector.broadcast %cst_96 : f32 to vector<1x16xf32>
      %357 = arith.cmpf ogt, %354, %356 : vector<1x16xf32>
      %358 = arith.select %357, %344, %329 : vector<1x16xi1>, vector<1x16xf32>
      %cst_97 = arith.constant 0.000000e+00 : f32
      %359 = vector.broadcast %cst_97 : f32 to vector<1x16xf32>
      %360 = arith.cmpf ogt, %354, %359 : vector<1x16xf32>
      %361 = arith.select %360, %332, %344 : vector<1x16xi1>, vector<1x16xf32>
      %cst_98 = arith.constant 5.000000e-01 : f32
      %362 = vector.broadcast %cst_98 : f32 to vector<1x16xf32>
      %363 = arith.cmpf ogt, %355, %362 : vector<1x16xf32>
      %cst_99 = arith.constant 1.000000e+00 : f32
      %364 = vector.broadcast %cst_99 : f32 to vector<1x16xf32>
      %365 = arith.maximumf %355, %364 : vector<1x16xf32>
      %366 = arith.divf %354, %365 : vector<1x16xf32>
      %367 = arith.addf %344, %366 : vector<1x16xf32>
      %368 = arith.addf %358, %361 : vector<1x16xf32>
      %cst_100 = arith.constant 5.000000e-01 : f32
      %369 = vector.broadcast %cst_100 : f32 to vector<1x16xf32>
      %370 = arith.mulf %369, %368 : vector<1x16xf32>
      %371 = arith.select %363, %367, %370 : vector<1x16xi1>, vector<1x16xf32>
      %372 = arith.maximumf %358, %371 : vector<1x16xf32>
      %373 = arith.minimumf %361, %372 : vector<1x16xf32>
      %374 = vector.broadcast %373 : vector<1x16xf32> to vector<8x16xf32>
      %375 = arith.subf %101, %374 : vector<8x16xf32>
      %376 = arith.minimumf %375, %37 : vector<8x16xf32>
      %377 = arith.subf %376, %arg9 : vector<8x16xf32>
      %cst_101 = arith.constant 5.000000e-01 : f32
      %378 = vector.broadcast %cst_101 : f32 to vector<8x16xf32>
      %379 = arith.mulf %378, %377 : vector<8x16xf32>
      %380 = arith.addf %376, %379 : vector<8x16xf32>
      scf.yield %376, %380 : vector<8x16xf32>, vector<8x16xf32>
    }
    %cst_24 = arith.constant dense<0.000000e+00> : vector<8x16xf32>
    %60 = tpu.matmul %59#0, %35, %cst_24 {dimension_numbers = #tpu.dot_dimension_numbers<[1], [0], [0], [1], [0, 0, 1, 1], [], []>} : vector<8x16xf32>, vector<16x16xf32>, vector<8x16xf32> -> vector<8x16xf32>
    %cst_25 = arith.constant 1.000000e+00 : f32
    %61 = vector.broadcast %cst_25 : f32 to vector<8x16xf32>
    %62 = arith.mulf %61, %60 : vector<8x16xf32>
    %cst_26 = arith.constant dense<0xFF800000> : vector<16xf32>
    %63 = vector.multi_reduction <maximumf>, %62, %cst_26 [0] : vector<8x16xf32> to vector<16xf32>
    %64 = vector.shape_cast %63 : vector<16xf32> to vector<1x16xf32>
    %65 = vector.broadcast %64 : vector<1x16xf32> to vector<8x16xf32>
    %66 = arith.subf %62, %65 : vector<8x16xf32>
    %67 = math.exp %66 : vector<8x16xf32>
    %cst_27 = arith.constant dense<0.000000e+00> : vector<16xf32>
    %68 = vector.multi_reduction <add>, %67, %cst_27 [0] : vector<8x16xf32> to vector<16xf32>
    %69 = vector.shape_cast %68 : vector<16xf32> to vector<1x16xf32>
    %70 = math.log %69 : vector<1x16xf32>
    %71 = arith.addf %64, %70 : vector<1x16xf32>
    %72 = arith.mulf %7, %62 : vector<8x16xf32>
    %cst_28 = arith.constant dense<0.000000e+00> : vector<16xf32>
    %73 = vector.multi_reduction <add>, %72, %cst_28 [0] : vector<8x16xf32> to vector<16xf32>
    %74 = vector.shape_cast %73 : vector<16xf32> to vector<1x16xf32>
    %75 = arith.subf %71, %74 : vector<1x16xf32>
    %76 = tpu.iota {dimensions = array<i32: 0>} : vector<8x16xi32>
    %77 = arith.sitofp %76 : vector<8x16xi32> to vector<8x16xf32>
    %78 = vector.broadcast %64 : vector<1x16xf32> to vector<8x16xf32>
    %79 = arith.cmpf oeq, %62, %78 : vector<8x16xf32>
    %cst_29 = arith.constant 8.000000e+00 : f32
    %80 = vector.broadcast %cst_29 : f32 to vector<8x16xf32>
    %81 = arith.select %79, %77, %80 : vector<8x16xi1>, vector<8x16xf32>
    %cst_30 = arith.constant dense<0x7F800000> : vector<16xf32>
    %82 = vector.multi_reduction <minimumf>, %81, %cst_30 [0] : vector<8x16xf32> to vector<16xf32>
    %83 = vector.shape_cast %82 : vector<16xf32> to vector<1x16xf32>
    %cst_31 = arith.constant 5.000000e-01 : f32
    %84 = vector.broadcast %cst_31 : f32 to vector<8x16xf32>
    %85 = arith.cmpf ogt, %7, %84 : vector<8x16xf32>
    %cst_32 = arith.constant 8.000000e+00 : f32
    %86 = vector.broadcast %cst_32 : f32 to vector<8x16xf32>
    %87 = arith.select %85, %77, %86 : vector<8x16xi1>, vector<8x16xf32>
    %cst_33 = arith.constant dense<0x7F800000> : vector<16xf32>
    %88 = vector.multi_reduction <minimumf>, %87, %cst_33 [0] : vector<8x16xf32> to vector<16xf32>
    %89 = vector.shape_cast %88 : vector<16xf32> to vector<1x16xf32>
    %90 = arith.cmpf oeq, %83, %89 : vector<1x16xf32>
    %91 = arith.extui %90 : vector<1x16xi1> to vector<1x16xi32>
    %92 = arith.sitofp %91 : vector<1x16xi32> to vector<1x16xf32>
    %c0_34 = arith.constant 0 : index
    %c0_35 = arith.constant 0 : index
    %c0_36 = arith.constant 0 : index
    %93 = vector.load %arg6[%c0_34, %c0_35, %c0_36] : memref<1x1x16xf32, #tpu.memory_space<vmem>>, vector<1x1x16xf32>
    %94 = vector.shape_cast %93 : vector<1x1x16xf32> to vector<1x16xf32>
    %95 = vector.shape_cast %75 : vector<1x16xf32> to vector<1x1x16xf32>
    tpu.vector_store %arg6[%c0_34, %c0_35, %c0_36], %95 {strides = array<i32>} : memref<1x1x16xf32, #tpu.memory_space<vmem>>, vector<1x1x16xf32>,
    %c0_37 = arith.constant 0 : index
    %c0_38 = arith.constant 0 : index
    %c0_39 = arith.constant 0 : index
    %96 = vector.load %arg7[%c0_37, %c0_38, %c0_39] : memref<1x1x16xf32, #tpu.memory_space<vmem>>, vector<1x1x16xf32>
    %97 = vector.shape_cast %96 : vector<1x1x16xf32> to vector<1x16xf32>
    %98 = vector.shape_cast %92 : vector<1x16xf32> to vector<1x1x16xf32>
    tpu.vector_store %arg7[%c0_37, %c0_38, %c0_39], %98 {strides = array<i32>} : memref<1x1x16xf32, #tpu.memory_space<vmem>>, vector<1x1x16xf32>,
    return
  }
  func.func @transform_0(%arg0: i32) -> (i32, i32, i32) {
    %c0_i32 = arith.constant 0 : i32
    %c0_i32_0 = arith.constant 0 : i32
    %c0_i32_1 = arith.constant 0 : i32
    return %arg0, %c0_i32, %c0_i32_0 : i32, i32, i32
  }
  func.func @transform_1(%arg0: i32) -> (i32, i32, i32) {
    %c0_i32 = arith.constant 0 : i32
    %c0_i32_0 = arith.constant 0 : i32
    %c0_i32_1 = arith.constant 0 : i32
    return %arg0, %c0_i32, %c0_i32_0 : i32, i32, i32
  }
  func.func @transform_2(%arg0: i32) -> (i32, i32, i32) {
    %c0_i32 = arith.constant 0 : i32
    %c0_i32_0 = arith.constant 0 : i32
    %c0_i32_1 = arith.constant 0 : i32
    return %arg0, %c0_i32, %c0_i32_0 : i32, i32, i32
  }
  func.func @transform_3(%arg0: i32) -> (i32, i32, i32) {
    %c0_i32 = arith.constant 0 : i32
    %c0_i32_0 = arith.constant 0 : i32
    %c0_i32_1 = arith.constant 0 : i32
    return %arg0, %c0_i32, %c0_i32_0 : i32, i32, i32
  }
  func.func @transform_4(%arg0: i32) -> (i32, i32) {
    %c0_i32 = arith.constant 0 : i32
    %c0_i32_0 = arith.constant 0 : i32
    %c0_i32_1 = arith.constant 0 : i32
    return %c0_i32, %c0_i32_0 : i32, i32
  }
  func.func @transform_5(%arg0: i32) -> (i32, i32, i32) {
    %c0_i32 = arith.constant 0 : i32
    %c0_i32_0 = arith.constant 0 : i32
    %c0_i32_1 = arith.constant 0 : i32
    return %arg0, %c0_i32, %c0_i32_0 : i32, i32, i32
  }
  func.func @transform_6(%arg0: i32) -> (i32, i32, i32) {
    %c0_i32 = arith.constant 0 : i32
    %c0_i32_0 = arith.constant 0 : i32
    %c0_i32_1 = arith.constant 0 : i32
    return %arg0, %c0_i32, %c0_i32_0 : i32, i32, i32
  }
}

</mosaic_0001>

<llo_original>
// kernel: tpu_custom_call.1
$region0: #{tpu_custom_call.1}
  #allocation0 [shape = 'u32[]', space=smem, size = 0x4, offset = 0x4, fixed_abs, tag = 'smem constant byte address 0x4 - core index']
  #allocation1 [shape = 'u32[144,128]{1,0:T(1,128)}', space=vmem, size = 0x12000, scoped, tag = 'internal scratch']
  %s0 = inlined_call_operand.hbm [shape: f32[1,16,32], index: 0, kind: input, shape index: {}]
  %s1 = inlined_call_operand.hbm [shape: f32[1,16,32], index: 1, kind: input, shape index: {}]
  %s2 = inlined_call_operand.hbm [shape: f32[1,8,16], index: 2, kind: input, shape index: {}]
  %s3 = inlined_call_operand.vmem [shape: f32[1,8,16], index: 3, kind: input, shape index: {}]
  %s4 = inlined_call_operand.hbm [shape: f32[16,16], index: 4, kind: input, shape index: {}]
  %s5 = inlined_call_operand.hbm [shape: f32[1,1,16], index: 5, kind: output, shape index: {0}]
  %s6 = inlined_call_operand.hbm [shape: f32[1,1,16], index: 6, kind: output, shape index: {1}]
  %7 = xla_tuple %s5, %s6
  %s8 = sld [smem:[#allocation0]]
  $region61: #{tpu_custom_call.1} parent=0
    _
  %s10 = ssub.s32 1, %s8
  %s11 = scalar_select 0, %s10, %s8
  $region1: #{tpu_custom_call.1} parent=0
    #allocation2 [shape = 'u8[8192]{0}', space=vmem, size = 0x2000, scoped, tag = 'input window, operand 0, single buffered']
    #allocation3 [shape = 's32[1]{0}', space=sflag, size = 0x4, scoped, tag = 'scoped memory for tpu_custom_call.1']
    #allocation4 [shape = 's32[1]{0}', space=sflag, size = 0x4, scoped, tag = 'scoped memory for tpu_custom_call.1']
    #allocation5 [shape = 'u8[8192]{0}', space=vmem, size = 0x2000, scoped, tag = 'input window, operand 1, single buffered']
    #allocation6 [shape = 's32[1]{0}', space=sflag, size = 0x4, scoped, tag = 'scoped memory for tpu_custom_call.1']
    #allocation7 [shape = 'u8[4096]{0}', space=vmem, size = 0x1000, scoped, tag = 'input window, operand 2, single buffered']
    #allocation8 [shape = 'u8[8192]{0}', space=vmem, size = 0x2000, scoped, tag = 'input window, operand 4, single buffered']
    #allocation9 [shape = 's32[1]{0}', space=sflag, size = 0x4, scoped, tag = 'scoped memory for tpu_custom_call.1']
    #allocation10 [shape = 'u8[512]{0}', space=vmem, size = 0x400, scoped, tag = 'output window, operand 0, single buffered']
    #allocation11 [shape = 'u8[512]{0}', space=vmem, size = 0x400, scoped, tag = 'output window, operand 1, single buffered']
    #allocation12 [shape = 's32[1]{0}', space=sflag, size = 0x4, scoped, tag = 'scoped memory for tpu_custom_call.1']
    %12 = vsyncpa [#allocation3], 0
    %13 = vsyncpa [#allocation6], 0
    %14 = vsyncpa [#allocation9], 0
    %15 = vsyncpa [#allocation4], 0
    %16 = vsyncpa [#allocation12], 0
    // Predicated region
    $region2: #{tpu_custom_call.1} parent=1 // pred_check
      _
    $region3: #{tpu_custom_call.1} parent=1 // pred_check_branch
      %18 = sbr.rel (0) target = $region5
    $region4: #{tpu_custom_call.1} parent=1 // pred_region
      %s20 = ssub.s32 256, 256
      %21 = vsyncadd [#allocation3], %s20
      %s22 = sshll.u32 [#allocation2], 4
      %s23 = int_to_ptr.vmem [resolvable:$true] %s22
      %28 = dma.hbm_to_vmem [thread:$0]  %s0, 256, %s23, [#allocation3], 128, 128, 8
    $region5: #{tpu_custom_call.1} parent=1 // pred_fallthru
      _
    // Predicated region
    $region6: #{tpu_custom_call.1} parent=1 // pred_check
      _
    $region7: #{tpu_custom_call.1} parent=1 // pred_check_branch
      %30 = sbr.rel (0) target = $region9
    $region8: #{tpu_custom_call.1} parent=1 // pred_region
      %s32 = ssub.s32 256, 256
      %33 = vsyncadd [#allocation6], %s32
      %s34 = sshll.u32 [#allocation5], 4
      %s35 = int_to_ptr.vmem [resolvable:$true] %s34
      %40 = dma.hbm_to_vmem [thread:$0]  %s1, 256, %s35, [#allocation6], 128, 128, 8
    $region9: #{tpu_custom_call.1} parent=1 // pred_fallthru
      _
    // Predicated region
    $region10: #{tpu_custom_call.1} parent=1 // pred_check
      _
    $region11: #{tpu_custom_call.1} parent=1 // pred_check_branch
      %42 = sbr.rel (0) target = $region13
    $region12: #{tpu_custom_call.1} parent=1 // pred_region
      %s44 = ssub.s32 128, 128
      %45 = vsyncadd [#allocation6], %s44
      %s47 = sshll.u32 [#allocation7], 4
      %s48 = int_to_ptr.vmem [resolvable:$true] %s47
      %50 = dma.hbm_to_vmem [thread:$0]  %s2, 128, %s48, [#allocation6]
    $region13: #{tpu_custom_call.1} parent=1 // pred_fallthru
      _
    // Predicated region
    $region14: #{tpu_custom_call.1} parent=1 // pred_check
      _
    $region15: #{tpu_custom_call.1} parent=1 // pred_check_branch
      %52 = sbr.rel (0) target = $region17
    $region16: #{tpu_custom_call.1} parent=1 // pred_region
      _
    $region17: #{tpu_custom_call.1} parent=1 // pred_fallthru
      _
    // Predicated region
    $region18: #{tpu_custom_call.1} parent=1 // pred_check
      _
    $region19: #{tpu_custom_call.1} parent=1 // pred_check_branch
      %54 = sbr.rel (0) target = $region21
    $region20: #{tpu_custom_call.1} parent=1 // pred_region
      %s56 = ssub.s32 256, 256
      %57 = vsyncadd [#allocation9], %s56
      %s58 = sshll.u32 [#allocation8], 4
      %s59 = int_to_ptr.vmem [resolvable:$true] %s58
      %64 = dma.hbm_to_vmem [thread:$0]  %s4, 256, %s59, [#allocation9], 128, 128, 8
    $region21: #{tpu_custom_call.1} parent=1 // pred_fallthru
      _
    // Predicated region
    $region22: #{tpu_custom_call.1} parent=1 // pred_check
      _
    $region23: #{tpu_custom_call.1} parent=1 // pred_check_branch
      %66 = sbr.rel (0) target = $region25
    $region24: #{tpu_custom_call.1} parent=1 // pred_region
      %67 = dma.done [#allocation3], 256
    $region25: #{tpu_custom_call.1} parent=1 // pred_fallthru
      _
    // Predicated region
    $region26: #{tpu_custom_call.1} parent=1 // pred_check
      _
    $region27: #{tpu_custom_call.1} parent=1 // pred_check_branch
      %69 = sbr.rel (0) target = $region29
    $region28: #{tpu_custom_call.1} parent=1 // pred_region
      %70 = dma.done [#allocation6], 256
    $region29: #{tpu_custom_call.1} parent=1 // pred_fallthru
      _
    // Predicated region
    $region30: #{tpu_custom_call.1} parent=1 // pred_check
      _
    $region31: #{tpu_custom_call.1} parent=1 // pred_check_branch
      %72 = sbr.rel (0) target = $region33
    $region32: #{tpu_custom_call.1} parent=1 // pred_region
      %73 = dma.done [#allocation6], 128
    $region33: #{tpu_custom_call.1} parent=1 // pred_fallthru
      _
    // Predicated region
    $region34: #{tpu_custom_call.1} parent=1 // pred_check
      _
    $region35: #{tpu_custom_call.1} parent=1 // pred_check_branch
      %75 = sbr.rel (0) target = $region37
    $region36: #{tpu_custom_call.1} parent=1 // pred_region
      %76 = dma.done [#allocation9], 256
    $region37: #{tpu_custom_call.1} parent=1 // pred_fallthru
      _
    %v78 = vld [vmem:[#allocation2] sm:$0xff]
    %v79 = vld [vmem:[#allocation2 + $0x8] sm:$0xff]
    %v80 = vld [vmem:[#allocation5] sm:$0xff]
    %v81 = vld [vmem:[#allocation5 + $0x8] sm:$0xff]
    %v82 = vld [vmem:[#allocation7] sm:$0xff]
    %v83 = vld [vmem:[%s3] sm:$0xff]
    %v84 = vld [vmem:[#allocation8] sm:$0xff]
    %v85 = vld [vmem:[#allocation8 + $0x8] sm:$0xff]
    %v86 = vmul.f32 %v78, %v78
    %v87 = vmul.f32 %v79, %v79
    %vm88 = vcmask 261120
    %v89 = vsel %vm88, %v86, 0.0
    %90 = vadd.xlane.f32.xlu0 %v89
    %v91 = vpop.xlane.xlu0 %90
    %v92 = vsel %vm88, %v87, 0.0
    %93 = vadd.xlane.f32.xlu0 %v92
    %v94 = vpop.xlane.xlu0 %93
    %v95 = vrsqrt.pop %v91
    %v96 = vmul.f32 %v91, %v95
    %vm97 = vcmp.eq.f32.partialorder %v91, inf
    %v98 = vsel %vm97, %v91, %v96
    %vm99 = vcmp.eq.f32.partialorder %v91, 0.0
    %v100 = vand.u32 %v91, 2147483648
    %v101 = vsel %vm99, %v100, %v98
    %v102 = vrsqrt.pop %v94
    %v103 = vmul.f32 %v94, %v102
    %vm104 = vcmp.eq.f32.partialorder %v94, inf
    %v105 = vsel %vm104, %v94, %v103
    %vm106 = vcmp.eq.f32.partialorder %v94, 0.0
    %v107 = vand.u32 %v94, 2147483648
    %v108 = vsel %vm106, %v107, %v105
    %v109 = vmax.f32 %v101, 1e-12
    %v110 = vmax.f32 %v108, 1e-12
    %v111 = vrcp.pop %v109
    %v112 = vmul.f32 %v78, %v111
    %v113 = vrcp.pop %v110
    %v114 = vmul.f32 %v79, %v113
    %v115 = vmul.f32 %v80, %v80
    %v116 = vmul.f32 %v81, %v81
    %v117 = vsel %vm88, %v115, 0.0
    %118 = vadd.xlane.f32.xlu0 %v117
    %v119 = vpop.xlane.xlu0 %118
    %v120 = vsel %vm88, %v116, 0.0
    %121 = vadd.xlane.f32.xlu0 %v120
    %v122 = vpop.xlane.xlu0 %121
    %v123 = vrsqrt.pop %v119
    %v124 = vmul.f32 %v119, %v123
    %vm125 = vcmp.eq.f32.partialorder %v119, inf
    %v126 = vsel %vm125, %v119, %v124
    %vm127 = vcmp.eq.f32.partialorder %v119, 0.0
    %v128 = vand.u32 %v119, 2147483648
    %v129 = vsel %vm127, %v128, %v126
    %v130 = vrsqrt.pop %v122
    %v131 = vmul.f32 %v122, %v130
    %vm132 = vcmp.eq.f32.partialorder %v122, inf
    %v133 = vsel %vm132, %v122, %v131
    %vm134 = vcmp.eq.f32.partialorder %v122, 0.0
    %v135 = vand.u32 %v122, 2147483648
    %v136 = vsel %vm134, %v135, %v133
    %v137 = vmax.f32 %v129, 1e-12
    %v138 = vmax.f32 %v136, 1e-12
    %v139 = vrcp.pop %v137
    %v140 = vmul.f32 %v80, %v139
    %v141 = vrcp.pop %v138
    %v142 = vmul.f32 %v81, %v141
    %v143 = vlaneseq
    %v144 = vshrl.u32 %v143, 7
    %v145 = vadd.s32 %v144, 8
    %v146 = vlaneseq
    %v147 = vand.u32 %v146, 127
    %vm148 = vcmp.eq.s32.totalorder %v144, %v147
    %vm149 = vcmp.eq.s32.totalorder %v145, %v147
    %v150 = vsel %vm148, 1, 0
    %v151 = vsel %vm149, 1, 0
    %v152 = vcvt.s32.f32 %v150
    %v153 = vcvt.s32.f32 %v151
    %v155 = vsel %vm88, %v112, 0
    %v158 = vsel %vm88, %v114, 0
    %v161 = vsel %vm88, %v140, 0
    %v164 = vsel %vm88, %v142, 0
    %166 = vmatprep.subr.mxu0 0.0
    %167 = vmatpush1.xpose.msra.mxu0 %v155
    %168 = vmatprep.subr.mxu0 0.0
    %169 = vmatpush1.xpose.msra.mxu0 %v158
    %170 = vmatprep.subr.mxu0 0.0
    %171 = vmatpush1.xpose.msra.mxu0 %v161
    %172 = vmatprep.subr.mxu0 0.0
    %173 = vmatpush1.xpose.msra.mxu0 %v164
    %174 = vmatprep.subr.mxu0 0.0
    %175 = vmatpush1.xpose.msra.mxu0 0.0
    %176 = vmatprep.subr.mxu0 0.0
    %177 = vmatpush1.xpose.msra.mxu0 0.0
    %178 = vmatprep.subr.mxu0 0.0
    %179 = vmatpush1.xpose.msra.mxu0 0.0
    %180 = vmatprep.subr.mxu0 0.0
    %181 = vmatpush1.xpose.msra.mxu0 0.0
    %182 = vmatprep.subr.mxu0 0.0
    %183 = vmatpush1.xpose.msra.mxu0 0.0
    %184 = vmatprep.subr.mxu0 0.0
    %185 = vmatpush1.xpose.msra.mxu0 0.0
    %186 = vmatprep.subr.mxu0 0.0
    %187 = vmatpush1.xpose.msra.mxu0 0.0
    %188 = vmatprep.subr.mxu0 0.0
    %189 = vmatpush1.xpose.msra.mxu0 0.0
    %190 = vmatprep.subr.mxu0 0.0
    %191 = vmatpush1.xpose.msra.mxu0 0.0
    %192 = vmatprep.subr.mxu0 0.0
    %193 = vmatpush1.xpose.msra.mxu0 0.0
    %194 = vmatprep.subr.mxu0 0.0
    %195 = vmatpush1.xpose.msra.mxu0 0.0
    %196 = vmatprep.subr.mxu0 0.0
    %197 = vmatpush1.xpose.msra.mxu0 0.0
    %198 = vmatprep.subr.mxu0 0.0
    %199 = vmatpush1.xpose.msra.mxu0 0.0
    %200 = vmatprep.subr.mxu0 0.0
    %201 = vmatpush1.xpose.msra.mxu0 0.0
    %202 = vmatprep.subr.mxu0 0.0
    %203 = vmatpush1.xpose.msra.mxu0 0.0
    %204 = vmatprep.subr.mxu0 0.0
    %205 = vmatpush1.xpose.msra.mxu0 0.0
    %206 = vmatprep.subr.mxu0 0.0
    %207 = vmatpush1.xpose.msra.mxu0 0.0
    %208 = vmatprep.subr.mxu0 0.0
    %209 = vmatpush1.xpose.msra.mxu0 0.0
    %210 = vmatprep.subr.mxu0 0.0
    %211 = vmatpush1.xpose.msra.mxu0 0.0
    %212 = vmatprep.subr.mxu0 0.0
    %213 = vmatpush1.xpose.msra.mxu0 0.0
    %214 = vmatprep.subr.mxu0 0.0
    %215 = vmatpush1.xpose.msra.mxu0 0.0
    %216 = vmatprep.subr.mxu0 0.0
    %217 = vmatpush1.xpose.msra.mxu0 0.0
    %218 = vmatprep.subr.mxu0 0.0
    %219 = vmatpush1.xpose.msra.mxu0 0.0
    %220 = vmatprep.subr.mxu0 0.0
    %221 = vmatpush1.xpose.msra.mxu0 0.0
    %222 = vmatprep.subr.mxu0 0.0
    %223 = vmatpush1.xpose.msra.mxu0 0.0
    %224 = vmatprep.subr.mxu0 0.0
    %225 = vmatpush1.xpose.msra.mxu0 0.0
    %226 = vmatprep.subr.mxu0 0.0
    %227 = vmatpush1.xpose.msra.mxu0 0.0
    %228 = vmatprep.subr.mxu0 0.0
    %229 = vmatpush1.xpose.msra.mxu0 0.0
    %230 = vmatprep.mubr.f32.mxu0 0.0
    %231 = vmatmul.mubr.f32.gmra.mrb[0].mxu0 %v155
    %v232 = vpop.f32.mrb[0].mxu0
    %v233 = vadd.f32 0.0, %v232
    %v234 = vpop.f32.mrb[0].mxu0
    %235 = vmatprep.mubr.f32.mxu0 0.0
    %236 = vmatmul.mubr.f32.gmra.mrb[0].mxu0 %v158
    %v237 = vpop.f32.mrb[0].mxu0
    %v238 = vadd.f32 0.0, %v237
    %v239 = vpop.f32.mrb[0].mxu0
    %240 = vdwg.mxu0
    %v241 = vmul.f32 %v233, %v84
    %v242 = vmul.f32 %v238, %v85
    %245 = vrot.lane.b32.xlu0 %v84, 16
    %v246 = vpop.permute.xlu0 %245
    %247 = vrot.lane.b32.xlu0 %v85, 16
    %v248 = vpop.permute.xlu0 %247
    %v251 = vmul.f32 %v233, %v246
    %v252 = vmul.f32 %v238, %v248
    %v253 = vmul.f32 %v82, 0.1
    %v254 = vand.u32 2147483647, %v241
    %v255 = vand.u32 2147483647, %v242
    %vm256 = vcmask 130048
    %v257 = vsel %vm256, %v254, 0.0
    %v258 = vsel %vm256, %v255, 0.0
    %v259 = vadd.f32 %v257, %v258
    %v260 = vrot.slane %v259, 4
    %v261 = vadd.f32 %v259, %v260
    %v262 = vrot.slane %v261, 2
    %v263 = vadd.f32 %v261, %v262
    %v264 = vrot.slane %v263, 1
    %v265 = vadd.f32 %v263, %v264
    %v266 = vsel %vm256, %v265, -inf
    %267 = vmax.xlane.f32.xlu0 %v266
    %v268 = vpop.xlane.xlu0 %267
    %v269 = vadd.f32 %v268, 1.0
    %v270 = vrcp.pop %v269
    %v271 = vmul.f32 1.0, %v270
    %v272 = vsub.f32 1.0, %v271
    %v273 = vmul.f32 %v272, %v152
    %v274 = vmul.f32 %v272, %v153
    %v275 = vmul.f32 %v271, %v241
    %v276 = vmul.f32 %v271, %v242
    %v277 = vsub.f32 %v273, %v275
    %v278 = vsub.f32 %v274, %v276
    %v279 = vpack.c.bf16 %v278, %v277
    %v280 = vmul.f32 %v271, %v82
    loop: start=0, step=1, limit=42
    $region38: #{tpu_custom_call.1} parent=1 // loop_pre_header
      _
    $region39: #{tpu_custom_call.1} parent=1 // loop_header
      %s282 = sphi 0, %s286
      %p283 = scmp.ge.s32.totalorder %s282, 42
      %v287 = vphi 0.0, %v810
      %v288 = vphi 0.0, %v813
    $region40: #{tpu_custom_call.1} parent=1 // loop_header_branch
      %285 = sbr.rel (%p283) target = $region44
    $region41: #{tpu_custom_call.1} parent=1 // loop_body
      %v289 = vpack.c.bf16 %v288, %v288
      %v291 = vsel %vm256, %v289, 0
      %293 = vmatprep.subr.bf16.mxu0 0
      %294 = vmatpush1.bf16.msra.mxu0 %v279
      %295 = vmatprep.subr.bf16.mxu0 0
      %296 = vmatpush1.bf16.msra.mxu0 0
      %297 = vmatprep.subr.bf16.mxu0 0
      %298 = vmatpush1.bf16.msra.mxu0 0
      %299 = vmatprep.subr.bf16.mxu0 0
      %300 = vmatpush1.bf16.msra.mxu0 0
      %301 = vmatprep.subr.bf16.mxu0 0
      %302 = vmatpush1.bf16.msra.mxu0 0
      %303 = vmatprep.subr.bf16.mxu0 0
      %304 = vmatpush1.bf16.msra.mxu0 0
      %305 = vmatprep.subr.bf16.mxu0 0
      %306 = vmatpush1.bf16.msra.mxu0 0
      %307 = vmatprep.subr.bf16.mxu0 0
      %308 = vmatpush1.bf16.msra.mxu0 0
      %309 = vmatprep.subr.bf16.mxu0 0
      %310 = vmatpush1.bf16.msra.mxu0 0
      %311 = vmatprep.subr.bf16.mxu0 0
      %312 = vmatpush1.bf16.msra.mxu0 0
      %313 = vmatprep.subr.bf16.mxu0 0
      %314 = vmatpush1.bf16.msra.mxu0 0
      %315 = vmatprep.subr.bf16.mxu0 0
      %316 = vmatpush1.bf16.msra.mxu0 0
      %317 = vmatprep.subr.bf16.mxu0 0
      %318 = vmatpush1.bf16.msra.mxu0 0
      %319 = vmatprep.subr.bf16.mxu0 0
      %320 = vmatpush1.bf16.msra.mxu0 0
      %321 = vmatprep.subr.bf16.mxu0 0
      %322 = vmatpush1.bf16.msra.mxu0 0
      %323 = vmatprep.subr.bf16.mxu0 0
      %324 = vmatpush1.bf16.msra.mxu0 0
      %325 = vmatprep.mubr.bf16.mxu0 0
      %326 = vmatmul.mubr.bf16.gmra.mrb[0].mxu0 %v291
      %v327 = vpop.f32.mrb[0].mxu0
      %v328 = vadd.f32 %v280, %v327
      %v329 = vpop.f32.mrb[0].mxu0
      %v330 = vpop.f32.mrb[0].mxu0
      %v331 = vpop.f32.mrb[0].mxu0
      %332 = vdwg.mxu0
      %v333 = vsub.f32 %v328, %v253
      %v334 = vsel %vm256, %v333, inf
      %v335 = vrot.slane %v334, 4
      %v336 = vmin.f32 %v334, %v335
      %v337 = vrot.slane %v336, 2
      %v338 = vmin.f32 %v336, %v337
      %v339 = vrot.slane %v338, 1
      %v340 = vmin.f32 %v338, %v339
      %v341 = vsel %vm256, %v328, -inf
      %v342 = vrot.slane %v341, 4
      %v343 = vmax.f32 %v341, %v342
      %v344 = vrot.slane %v343, 2
      %v345 = vmax.f32 %v343, %v344
      %v346 = vrot.slane %v345, 1
      %v347 = vmax.f32 %v345, %v346
      %v348 = vsel %vm256, %v328, 0.0
      %v349 = vrot.slane %v348, 4
      %v350 = vadd.f32 %v348, %v349
      %v351 = vrot.slane %v350, 2
      %v352 = vadd.f32 %v350, %v351
      %v353 = vrot.slane %v352, 1
      %v354 = vadd.f32 %v352, %v353
      %v355 = vrcp.pop 8.0
      %v356 = vmul.f32 %v354, %v355
      %v357 = vmax.f32 %v340, %v356
      %v358 = vmin.f32 %v347, %v357
      %v359 = vsub.f32 %v328, %v358
      %v360 = vmin.f32 %v359, %v253
      %vm361 = vcmp.lt.f32.partialorder %v359, %v253
      %v362 = vsel %vm361, 1, 0
      %v363 = vcvt.s32.f32 %v362
      %365 = vrot.lane.b32.xlu0 %v363, 16
      %v366 = vpop.permute.xlu0 %365
      %v368 = vsel %vm256, %v360, %v366
      %v369 = vsel %vm88, %v368, 0.0
      %v370 = vrot.slane %v369, 4
      %v371 = vadd.f32 %v369, %v370
      %v372 = vrot.slane %v371, 2
      %v373 = vadd.f32 %v371, %v372
      %v374 = vrot.slane %v373, 1
      %v375 = vadd.f32 %v373, %v374
      %vm376 = vcmp.gt.f32.partialorder %v375, 0.0
      %v377 = vsel %vm376, %v358, %v340
      %v378 = vsel %vm376, %v347, %v358
      %vm379 = vcmp.gt.f32.partialorder %v375, 0.5
      %v380 = vmax.f32 %v375, 1.0
      %382 = vrot.lane.b32.xlu0 %v380, 112
      %v383 = vpop.permute.xlu0 %382
      %v385 = vrcp.pop %v383
      %v386 = vmul.f32 %v375, %v385
      %v387 = vadd.f32 %v358, %v386
      %v388 = vadd.f32 %v377, %v378
      %v389 = vmul.f32 %v388, 0.5
      %391 = vrot.lane.b32.xlu0 %v387, 16
      %v392 = vpop.permute.xlu0 %391
      %395 = vrot.lane.b32.xlu0 %v389, 16
      %v396 = vpop.permute.xlu0 %395
      %v398 = vsel %vm379, %v392, %v396
      %400 = vrot.lane.b32.xlu0 %v398, 112
      %v401 = vpop.permute.xlu0 %400
      %v403 = vmax.f32 %v377, %v401
      %v404 = vmin.f32 %v378, %v403
      %v405 = vlaneseq
      %v406 = vshrl.u32 %v405, 7
      %v407 = vsub.s32 0, %v406
      %v408 = vrot.slane %v404, %v407
      %v409 = vsub.f32 %v328, %v408
      %v410 = vmin.f32 %v409, %v253
      %vm411 = vcmp.lt.f32.partialorder %v409, %v253
      %v412 = vsel %vm411, 1, 0
      %v413 = vcvt.s32.f32 %v412
      %415 = vrot.lane.b32.xlu0 %v413, 16
      %v416 = vpop.permute.xlu0 %415
      %v418 = vsel %vm256, %v410, %v416
      %v419 = vsel %vm88, %v418, 0.0
      %v420 = vrot.slane %v419, 4
      %v421 = vadd.f32 %v419, %v420
      %v422 = vrot.slane %v421, 2
      %v423 = vadd.f32 %v421, %v422
      %v424 = vrot.slane %v423, 1
      %v425 = vadd.f32 %v423, %v424
      %vm426 = vcmp.gt.f32.partialorder %v425, 0.0
      %v427 = vsel %vm426, %v404, %v377
      %v428 = vsel %vm426, %v378, %v404
      %vm429 = vcmp.gt.f32.partialorder %v425, 0.5
      %v430 = vmax.f32 %v425, 1.0
      %432 = vrot.lane.b32.xlu0 %v430, 112
      %v433 = vpop.permute.xlu0 %432
      %v435 = vrcp.pop %v433
      %v436 = vmul.f32 %v425, %v435
      %v437 = vadd.f32 %v404, %v436
      %v438 = vadd.f32 %v427, %v428
      %v439 = vmul.f32 %v438, 0.5
      %441 = vrot.lane.b32.xlu0 %v437, 16
      %v442 = vpop.permute.xlu0 %441
      %445 = vrot.lane.b32.xlu0 %v439, 16
      %v446 = vpop.permute.xlu0 %445
      %v448 = vsel %vm429, %v442, %v446
      %450 = vrot.lane.b32.xlu0 %v448, 112
      %v451 = vpop.permute.xlu0 %450
      %v453 = vmax.f32 %v427, %v451
      %v454 = vmin.f32 %v428, %v453
      %v455 = vlaneseq
      %v456 = vshrl.u32 %v455, 7
      %v457 = vsub.s32 0, %v456
      %v458 = vrot.slane %v454, %v457
      %v459 = vsub.f32 %v328, %v458
      %v460 = vmin.f32 %v459, %v253
      %vm461 = vcmp.lt.f32.partialorder %v459, %v253
      %v462 = vsel %vm461, 1, 0
      %v463 = vcvt.s32.f32 %v462
      %465 = vrot.lane.b32.xlu0 %v463, 16
      %v466 = vpop.permute.xlu0 %465
      %v468 = vsel %vm256, %v460, %v466
      %v469 = vsel %vm88, %v468, 0.0
      %v470 = vrot.slane %v469, 4
      %v471 = vadd.f32 %v469, %v470
      %v472 = vrot.slane %v471, 2
      %v473 = vadd.f32 %v471, %v472
      %v474 = vrot.slane %v473, 1
      %v475 = vadd.f32 %v473, %v474
      %vm476 = vcmp.gt.f32.partialorder %v475, 0.0
      %v477 = vsel %vm476, %v454, %v427
      %v478 = vsel %vm476, %v428, %v454
      %vm479 = vcmp.gt.f32.partialorder %v475, 0.5
      %v480 = vmax.f32 %v475, 1.0
      %482 = vrot.lane.b32.xlu0 %v480, 112
      %v483 = vpop.permute.xlu0 %482
      %v485 = vrcp.pop %v483
      %v486 = vmul.f32 %v475, %v485
      %v487 = vadd.f32 %v454, %v486
      %v488 = vadd.f32 %v477, %v478
      %v489 = vmul.f32 %v488, 0.5
      %491 = vrot.lane.b32.xlu0 %v487, 16
      %v492 = vpop.permute.xlu0 %491
      %495 = vrot.lane.b32.xlu0 %v489, 16
      %v496 = vpop.permute.xlu0 %495
      %v498 = vsel %vm479, %v492, %v496
      %500 = vrot.lane.b32.xlu0 %v498, 112
      %v501 = vpop.permute.xlu0 %500
      %v503 = vmax.f32 %v477, %v501
      %v504 = vmin.f32 %v478, %v503
      %v505 = vlaneseq
      %v506 = vshrl.u32 %v505, 7
      %v507 = vsub.s32 0, %v506
      %v508 = vrot.slane %v504, %v507
      %v509 = vsub.f32 %v328, %v508
      %v510 = vmin.f32 %v509, %v253
      %vm511 = vcmp.lt.f32.partialorder %v509, %v253
      %v512 = vsel %vm511, 1, 0
      %v513 = vcvt.s32.f32 %v512
      %515 = vrot.lane.b32.xlu0 %v513, 16
      %v516 = vpop.permute.xlu0 %515
      %v518 = vsel %vm256, %v510, %v516
      %v519 = vsel %vm88, %v518, 0.0
      %v520 = vrot.slane %v519, 4
      %v521 = vadd.f32 %v519, %v520
      %v522 = vrot.slane %v521, 2
      %v523 = vadd.f32 %v521, %v522
      %v524 = vrot.slane %v523, 1
      %v525 = vadd.f32 %v523, %v524
      %vm526 = vcmp.gt.f32.partialorder %v525, 0.0
      %v527 = vsel %vm526, %v504, %v477
      %v528 = vsel %vm526, %v478, %v504
      %vm529 = vcmp.gt.f32.partialorder %v525, 0.5
      %v530 = vmax.f32 %v525, 1.0
      %532 = vrot.lane.b32.xlu0 %v530, 112
      %v533 = vpop.permute.xlu0 %532
      %v535 = vrcp.pop %v533
      %v536 = vmul.f32 %v525, %v535
      %v537 = vadd.f32 %v504, %v536
      %v538 = vadd.f32 %v527, %v528
      %v539 = vmul.f32 %v538, 0.5
      %541 = vrot.lane.b32.xlu0 %v537, 16
      %v542 = vpop.permute.xlu0 %541
      %545 = vrot.lane.b32.xlu0 %v539, 16
      %v546 = vpop.permute.xlu0 %545
      %v548 = vsel %vm529, %v542, %v546
      %550 = vrot.lane.b32.xlu0 %v548, 112
      %v551 = vpop.permute.xlu0 %550
      %v553 = vmax.f32 %v527, %v551
      %v554 = vmin.f32 %v528, %v553
      %v555 = vlaneseq
      %v556 = vshrl.u32 %v555, 7
      %v557 = vsub.s32 0, %v556
      %v558 = vrot.slane %v554, %v557
      %v559 = vsub.f32 %v328, %v558
      %v560 = vmin.f32 %v559, %v253
      %vm561 = vcmp.lt.f32.partialorder %v559, %v253
      %v562 = vsel %vm561, 1, 0
      %v563 = vcvt.s32.f32 %v562
      %565 = vrot.lane.b32.xlu0 %v563, 16
      %v566 = vpop.permute.xlu0 %565
      %v568 = vsel %vm256, %v560, %v566
      %v569 = vsel %vm88, %v568, 0.0
      %v570 = vrot.slane %v569, 4
      %v571 = vadd.f32 %v569, %v570
      %v572 = vrot.slane %v571, 2
      %v573 = vadd.f32 %v571, %v572
      %v574 = vrot.slane %v573, 1
      %v575 = vadd.f32 %v573, %v574
      %vm576 = vcmp.gt.f32.partialorder %v575, 0.0
      %v577 = vsel %vm576, %v554, %v527
      %v578 = vsel %vm576, %v528, %v554
      %vm579 = vcmp.gt.f32.partialorder %v575, 0.5
      %v580 = vmax.f32 %v575, 1.0
      %582 = vrot.lane.b32.xlu0 %v580, 112
      %v583 = vpop.permute.xlu0 %582
      %v585 = vrcp.pop %v583
      %v586 = vmul.f32 %v575, %v585
      %v587 = vadd.f32 %v554, %v586
      %v588 = vadd.f32 %v577, %v578
      %v589 = vmul.f32 %v588, 0.5
      %591 = vrot.lane.b32.xlu0 %v587, 16
      %v592 = vpop.permute.xlu0 %591
      %595 = vrot.lane.b32.xlu0 %v589, 16
      %v596 = vpop.permute.xlu0 %595
      %v598 = vsel %vm579, %v592, %v596
      %600 = vrot.lane.b32.xlu0 %v598, 112
      %v601 = vpop.permute.xlu0 %600
      %v603 = vmax.f32 %v577, %v601
      %v604 = vmin.f32 %v578, %v603
      %v605 = vlaneseq
      %v606 = vshrl.u32 %v605, 7
      %v607 = vsub.s32 0, %v606
      %v608 = vrot.slane %v604, %v607
      %v609 = vsub.f32 %v328, %v608
      %v610 = vmin.f32 %v609, %v253
      %vm611 = vcmp.lt.f32.partialorder %v609, %v253
      %v612 = vsel %vm611, 1, 0
      %v613 = vcvt.s32.f32 %v612
      %615 = vrot.lane.b32.xlu0 %v613, 16
      %v616 = vpop.permute.xlu0 %615
      %v618 = vsel %vm256, %v610, %v616
      %v619 = vsel %vm88, %v618, 0.0
      %v620 = vrot.slane %v619, 4
      %v621 = vadd.f32 %v619, %v620
      %v622 = vrot.slane %v621, 2
      %v623 = vadd.f32 %v621, %v622
      %v624 = vrot.slane %v623, 1
      %v625 = vadd.f32 %v623, %v624
      %vm626 = vcmp.gt.f32.partialorder %v625, 0.0
      %v627 = vsel %vm626, %v604, %v577
      %v628 = vsel %vm626, %v578, %v604
      %vm629 = vcmp.gt.f32.partialorder %v625, 0.5
      %v630 = vmax.f32 %v625, 1.0
      %632 = vrot.lane.b32.xlu0 %v630, 112
      %v633 = vpop.permute.xlu0 %632
      %v635 = vrcp.pop %v633
      %v636 = vmul.f32 %v625, %v635
      %v637 = vadd.f32 %v604, %v636
      %v638 = vadd.f32 %v627, %v628
      %v639 = vmul.f32 %v638, 0.5
      %641 = vrot.lane.b32.xlu0 %v637, 16
      %v642 = vpop.permute.xlu0 %641
      %645 = vrot.lane.b32.xlu0 %v639, 16
      %v646 = vpop.permute.xlu0 %645
      %v648 = vsel %vm629, %v642, %v646
      %650 = vrot.lane.b32.xlu0 %v648, 112
      %v651 = vpop.permute.xlu0 %650
      %v653 = vmax.f32 %v627, %v651
      %v654 = vmin.f32 %v628, %v653
      %v655 = vlaneseq
      %v656 = vshrl.u32 %v655, 7
      %v657 = vsub.s32 0, %v656
      %v658 = vrot.slane %v654, %v657
      %v659 = vsub.f32 %v328, %v658
      %v660 = vmin.f32 %v659, %v253
      %vm661 = vcmp.lt.f32.partialorder %v659, %v253
      %v662 = vsel %vm661, 1, 0
      %v663 = vcvt.s32.f32 %v662
      %665 = vrot.lane.b32.xlu0 %v663, 16
      %v666 = vpop.permute.xlu0 %665
      %v668 = vsel %vm256, %v660, %v666
      %v669 = vsel %vm88, %v668, 0.0
      %v670 = vrot.slane %v669, 4
      %v671 = vadd.f32 %v669, %v670
      %v672 = vrot.slane %v671, 2
      %v673 = vadd.f32 %v671, %v672
      %v674 = vrot.slane %v673, 1
      %v675 = vadd.f32 %v673, %v674
      %vm676 = vcmp.gt.f32.partialorder %v675, 0.0
      %v677 = vsel %vm676, %v654, %v627
      %v678 = vsel %vm676, %v628, %v654
      %vm679 = vcmp.gt.f32.partialorder %v675, 0.5
      %v680 = vmax.f32 %v675, 1.0
      %682 = vrot.lane.b32.xlu0 %v680, 112
      %v683 = vpop.permute.xlu0 %682
      %v685 = vrcp.pop %v683
      %v686 = vmul.f32 %v675, %v685
      %v687 = vadd.f32 %v654, %v686
      %v688 = vadd.f32 %v677, %v678
      %v689 = vmul.f32 %v688, 0.5
      %691 = vrot.lane.b32.xlu0 %v687, 16
      %v692 = vpop.permute.xlu0 %691
      %695 = vrot.lane.b32.xlu0 %v689, 16
      %v696 = vpop.permute.xlu0 %695
      %v698 = vsel %vm679, %v692, %v696
      %700 = vrot.lane.b32.xlu0 %v698, 112
      %v701 = vpop.permute.xlu0 %700
      %v703 = vmax.f32 %v677, %v701
      %v704 = vmin.f32 %v678, %v703
      %v705 = vlaneseq
      %v706 = vshrl.u32 %v705, 7
      %v707 = vsub.s32 0, %v706
      %v708 = vrot.slane %v704, %v707
      %v709 = vsub.f32 %v328, %v708
      %v710 = vmin.f32 %v709, %v253
      %vm711 = vcmp.lt.f32.partialorder %v709, %v253
      %v712 = vsel %vm711, 1, 0
      %v713 = vcvt.s32.f32 %v712
      %715 = vrot.lane.b32.xlu0 %v713, 16
      %v716 = vpop.permute.xlu0 %715
      %v718 = vsel %vm256, %v710, %v716
      %v719 = vsel %vm88, %v718, 0.0
      %v720 = vrot.slane %v719, 4
      %v721 = vadd.f32 %v719, %v720
      %v722 = vrot.slane %v721, 2
      %v723 = vadd.f32 %v721, %v722
      %v724 = vrot.slane %v723, 1
      %v725 = vadd.f32 %v723, %v724
      %vm726 = vcmp.gt.f32.partialorder %v725, 0.0
      %v727 = vsel %vm726, %v704, %v677
      %v728 = vsel %vm726, %v678, %v704
      %vm729 = vcmp.gt.f32.partialorder %v725, 0.5
      %v730 = vmax.f32 %v725, 1.0
      %732 = vrot.lane.b32.xlu0 %v730, 112
      %v733 = vpop.permute.xlu0 %732
      %v735 = vrcp.pop %v733
      %v736 = vmul.f32 %v725, %v735
      %v737 = vadd.f32 %v704, %v736
      %v738 = vadd.f32 %v727, %v728
      %v739 = vmul.f32 %v738, 0.5
      %741 = vrot.lane.b32.xlu0 %v737, 16
      %v742 = vpop.permute.xlu0 %741
      %745 = vrot.lane.b32.xlu0 %v739, 16
      %v746 = vpop.permute.xlu0 %745
      %v748 = vsel %vm729, %v742, %v746
      %750 = vrot.lane.b32.xlu0 %v748, 112
      %v751 = vpop.permute.xlu0 %750
      %v753 = vmax.f32 %v727, %v751
      %v754 = vmin.f32 %v728, %v753
      %v755 = vlaneseq
      %v756 = vshrl.u32 %v755, 7
      %v757 = vsub.s32 0, %v756
      %v758 = vrot.slane %v754, %v757
      %v759 = vsub.f32 %v328, %v758
      %v760 = vmin.f32 %v759, %v253
      %vm761 = vcmp.lt.f32.partialorder %v759, %v253
      %v762 = vsel %vm761, 1, 0
      %v763 = vcvt.s32.f32 %v762
      %765 = vrot.lane.b32.xlu0 %v763, 16
      %v766 = vpop.permute.xlu0 %765
      %v768 = vsel %vm256, %v760, %v766
      %v769 = vsel %vm88, %v768, 0.0
      %v770 = vrot.slane %v769, 4
      %v771 = vadd.f32 %v769, %v770
      %v772 = vrot.slane %v771, 2
      %v773 = vadd.f32 %v771, %v772
      %v774 = vrot.slane %v773, 1
      %v775 = vadd.f32 %v773, %v774
      %vm776 = vcmp.gt.f32.partialorder %v775, 0.0
      %v777 = vsel %vm776, %v754, %v727
      %v778 = vsel %vm776, %v728, %v754
      %vm779 = vcmp.gt.f32.partialorder %v775, 0.5
      %v780 = vmax.f32 %v775, 1.0
      %782 = vrot.lane.b32.xlu0 %v780, 112
      %v783 = vpop.permute.xlu0 %782
      %v785 = vrcp.pop %v783
      %v786 = vmul.f32 %v775, %v785
      %v787 = vadd.f32 %v754, %v786
      %v788 = vadd.f32 %v777, %v778
      %v789 = vmul.f32 %v788, 0.5
      %791 = vrot.lane.b32.xlu0 %v787, 16
      %v792 = vpop.permute.xlu0 %791
      %795 = vrot.lane.b32.xlu0 %v789, 16
      %v796 = vpop.permute.xlu0 %795
      %v798 = vsel %vm779, %v792, %v796
      %800 = vrot.lane.b32.xlu0 %v798, 112
      %v801 = vpop.permute.xlu0 %800
      %v803 = vmax.f32 %v777, %v801
      %v804 = vmin.f32 %v778, %v803
      %v805 = vlaneseq
      %v806 = vshrl.u32 %v805, 7
      %v807 = vsub.s32 0, %v806
      %v808 = vrot.slane %v804, %v807
      %v809 = vsub.f32 %v328, %v808
      %v810 = vmin.f32 %v809, %v253
      %v811 = vsub.f32 %v810, %v287
      %v812 = vmul.f32 %v811, 0.5
      %v813 = vadd.f32 %v810, %v812
    $region42: #{tpu_custom_call.1} parent=1 // loop_footer
      %s286 = sadd.s32 1, %s282
    $region43: #{tpu_custom_call.1} parent=1 // loop_footer_branch
      %281 = sbr.rel target = $region39
    $region44: #{tpu_custom_call.1} parent=1 // loop_exit
      _
    %816 = vrot.lane.b32.xlu0 %v251, 112
    %v817 = vpop.permute.xlu0 %816
    %818 = vrot.lane.b32.xlu0 %v252, 112
    %v819 = vpop.permute.xlu0 %818
    %v823 = vsel %vm256, %v287, 0
    %825 = vmatprep.subr.mxu0 0.0
    %826 = vmatpush1.msra.mxu0 %v817
    %827 = vmatprep.subr.mxu0 0.0
    %828 = vmatpush1.msra.mxu0 %v819
    %829 = vmatprep.subr.mxu0 0.0
    %830 = vmatpush1.msra.mxu0 0.0
    %831 = vmatprep.subr.mxu0 0.0
    %832 = vmatpush1.msra.mxu0 0.0
    %833 = vmatprep.subr.mxu0 0.0
    %834 = vmatpush1.msra.mxu0 0.0
    %835 = vmatprep.subr.mxu0 0.0
    %836 = vmatpush1.msra.mxu0 0.0
    %837 = vmatprep.subr.mxu0 0.0
    %838 = vmatpush1.msra.mxu0 0.0
    %839 = vmatprep.subr.mxu0 0.0
    %840 = vmatpush1.msra.mxu0 0.0
    %841 = vmatprep.subr.mxu0 0.0
    %842 = vmatpush1.msra.mxu0 0.0
    %843 = vmatprep.subr.mxu0 0.0
    %844 = vmatpush1.msra.mxu0 0.0
    %845 = vmatprep.subr.mxu0 0.0
    %846 = vmatpush1.msra.mxu0 0.0
    %847 = vmatprep.subr.mxu0 0.0
    %848 = vmatpush1.msra.mxu0 0.0
    %849 = vmatprep.subr.mxu0 0.0
    %850 = vmatpush1.msra.mxu0 0.0
    %851 = vmatprep.subr.mxu0 0.0
    %852 = vmatpush1.msra.mxu0 0.0
    %853 = vmatprep.subr.mxu0 0.0
    %854 = vmatpush1.msra.mxu0 0.0
    %855 = vmatprep.subr.mxu0 0.0
    %856 = vmatpush1.msra.mxu0 0.0
    %857 = vmatprep.subr.mxu0 0.0
    %858 = vmatpush1.msra.mxu0 0.0
    %859 = vmatprep.subr.mxu0 0.0
    %860 = vmatpush1.msra.mxu0 0.0
    %861 = vmatprep.subr.mxu0 0.0
    %862 = vmatpush1.msra.mxu0 0.0
    %863 = vmatprep.subr.mxu0 0.0
    %864 = vmatpush1.msra.mxu0 0.0
    %865 = vmatprep.subr.mxu0 0.0
    %866 = vmatpush1.msra.mxu0 0.0
    %867 = vmatprep.subr.mxu0 0.0
    %868 = vmatpush1.msra.mxu0 0.0
    %869 = vmatprep.subr.mxu0 0.0
    %870 = vmatpush1.msra.mxu0 0.0
    %871 = vmatprep.subr.mxu0 0.0
    %872 = vmatpush1.msra.mxu0 0.0
    %873 = vmatprep.subr.mxu0 0.0
    %874 = vmatpush1.msra.mxu0 0.0
    %875 = vmatprep.subr.mxu0 0.0
    %876 = vmatpush1.msra.mxu0 0.0
    %877 = vmatprep.subr.mxu0 0.0
    %878 = vmatpush1.msra.mxu0 0.0
    %879 = vmatprep.subr.mxu0 0.0
    %880 = vmatpush1.msra.mxu0 0.0
    %881 = vmatprep.subr.mxu0 0.0
    %882 = vmatpush1.msra.mxu0 0.0
    %883 = vmatprep.subr.mxu0 0.0
    %884 = vmatpush1.msra.mxu0 0.0
    %885 = vmatprep.subr.mxu0 0.0
    %886 = vmatpush1.msra.mxu0 0.0
    %887 = vmatprep.subr.mxu0 0.0
    %888 = vmatpush1.msra.mxu0 0.0
    %889 = vmatprep.mubr.f32.mxu0 0.0
    %890 = vmatmul.mubr.f32.gmra.mrb[0].mxu0 %v823
    %v891 = vpop.f32.mrb[0].mxu0
    %v892 = vadd.f32 0.0, %v891
    %v893 = vpop.f32.mrb[0].mxu0
    %894 = vdwg.mxu0
    %v895 = vsel %vm256, %v892, -inf
    %v896 = vrot.slane %v895, 4
    %v897 = vmax.f32 %v895, %v896
    %v898 = vrot.slane %v897, 2
    %v899 = vmax.f32 %v897, %v898
    %v900 = vrot.slane %v899, 1
    %v901 = vmax.f32 %v899, %v900
    %v902 = vsub.f32 %v892, %v901
    %v903 = vmul.f32 %v902, 1.442695
    %v904 = vpow.pop %v903
    %v905 = vsel %vm256, %v904, 0.0
    %v906 = vrot.slane %v905, 4
    %v907 = vadd.f32 %v905, %v906
    %v908 = vrot.slane %v907, 2
    %v909 = vadd.f32 %v907, %v908
    %v910 = vrot.slane %v909, 1
    %v911 = vadd.f32 %v909, %v910
    %v912 = vlog2.pop %v911
    %v913 = vmul.f32 %v912, 0.6931472
    %v914 = vadd.f32 %v901, %v913
    %v915 = vmul.f32 %v83, %v892
    %v916 = vsel %vm256, %v915, 0.0
    %v917 = vrot.slane %v916, 4
    %v918 = vadd.f32 %v916, %v917
    %v919 = vrot.slane %v918, 2
    %v920 = vadd.f32 %v918, %v919
    %v921 = vrot.slane %v920, 1
    %v922 = vadd.f32 %v920, %v921
    %v923 = vsub.f32 %v914, %v922
    %v924 = vcvt.s32.f32 %v144
    %vm925 = vcmp.eq.f32.partialorder %v892, %v901
    %v926 = vsel %vm925, %v924, 8.0
    %v927 = vsel %vm256, %v926, inf
    %v928 = vrot.slane %v927, 4
    %v929 = vmin.f32 %v927, %v928
    %v930 = vrot.slane %v929, 2
    %v931 = vmin.f32 %v929, %v930
    %v932 = vrot.slane %v931, 1
    %v933 = vmin.f32 %v931, %v932
    %vm934 = vcmp.gt.f32.partialorder %v83, 0.5
    %v935 = vsel %vm934, %v924, 8.0
    %v936 = vsel %vm256, %v935, inf
    %v937 = vrot.slane %v936, 4
    %v938 = vmin.f32 %v936, %v937
    %v939 = vrot.slane %v938, 2
    %v940 = vmin.f32 %v938, %v939
    %v941 = vrot.slane %v940, 1
    %v942 = vmin.f32 %v940, %v941
    %vm943 = vcmp.eq.f32.partialorder %v933, %v942
    %v944 = vsel %vm943, 1, 0
    %v945 = vcvt.s32.f32 %v944
    %vm946 = vcmask 122880
    %947 = vst.msk [vmem:[#allocation10] sm:$0x1] %vm946, %v923
    %948 = vst.msk [vmem:[#allocation11] sm:$0x1] %vm946, %v945
    // Predicated region
    $region45: #{tpu_custom_call.1} parent=1 // pred_check
      _
    $region46: #{tpu_custom_call.1} parent=1 // pred_check_branch
      %950 = sbr.rel (0) target = $region48
    $region47: #{tpu_custom_call.1} parent=1 // pred_region
      %s952 = ssub.s32 16, 16
      %953 = vsyncadd [#allocation4], %s952
      %s955 = sshll.u32 [#allocation10], 4
      %s956 = int_to_ptr.vmem [resolvable:$true] %s955
      %958 = dma.vmem_to_hbm [thread:$0]  %s956, 16, %s5, [#allocation4]
    $region48: #{tpu_custom_call.1} parent=1 // pred_fallthru
      _
    // Predicated region
    $region49: #{tpu_custom_call.1} parent=1 // pred_check
      _
    $region50: #{tpu_custom_call.1} parent=1 // pred_check_branch
      %960 = sbr.rel (0) target = $region52
    $region51: #{tpu_custom_call.1} parent=1 // pred_region
      %s962 = ssub.s32 16, 16
      %963 = vsyncadd [#allocation12], %s962
      %s965 = sshll.u32 [#allocation11], 4
      %s966 = int_to_ptr.vmem [resolvable:$true] %s965
      %968 = dma.vmem_to_hbm [thread:$0]  %s966, 16, %s6, [#allocation12]
    $region52: #{tpu_custom_call.1} parent=1 // pred_fallthru
      _
    // Predicated region
    $region53: #{tpu_custom_call.1} parent=1 // pred_check
      _
    $region54: #{tpu_custom_call.1} parent=1 // pred_check_branch
      %970 = sbr.rel (0) target = $region56
    $region55: #{tpu_custom_call.1} parent=1 // pred_region
      %971 = dma.done [#allocation4], 16
    $region56: #{tpu_custom_call.1} parent=1 // pred_fallthru
      _
    // Predicated region
    $region57: #{tpu_custom_call.1} parent=1 // pred_check
      _
    $region58: #{tpu_custom_call.1} parent=1 // pred_check_branch
      %973 = sbr.rel (0) target = $region60
    $region59: #{tpu_custom_call.1} parent=1 // pred_region
      %974 = dma.done [#allocation12], 16
    $region60: #{tpu_custom_call.1} parent=1 // pred_fallthru
      _
    %975 = vsyncpa [#allocation3], 1
    %976 = vsyncpa [#allocation6], 1
    %977 = vsyncpa [#allocation9], 1
    %978 = vsyncpa [#allocation4], 1
    %979 = vsyncpa [#allocation12], 1

</llo_original>
